<compile_context>
chip_gen: v5e
topology: v5e:2x2
jax: 0.10.0
libtpu: 0.0.40
codegen_flags: <defaults>
</compile_context>

<pallas_src>
import functools

import jax
import jax.numpy as jnp
from jax.experimental import pallas as pl
from jax.experimental.pallas import tpu as pltpu


CPAD = 128      # lane width: channel dims zero-padded to this inside the kernel
T_CHUNK = 256   # per-layer time-tile (rows); toy T < 256 -> single chunk


# ----------------------------- Pallas kernel --------------------------------

def _postnet_kernel(x_ref, w_ref, b_ref, o_ref, ping, pong,
                    *, K, T, pad, c_in, c_out, n_layers, t_chunk):
    """Fused 5-layer Postnet for ONE batch element (grid axis = batch).

    x_ref : (T, c_in)            input, NLC layout (batch squeezed)
    w_ref : (L, K, CPAD, CPAD)   BN-folded conv weights, bf16, channel-padded
    b_ref : (L, 1, CPAD)         BN-folded biases, f32, channel-padded
    o_ref : (T, c_out)           output (valid mel lanes only), NLC layout
    ping/pong : (T + 2*pad, CPAD) f32 VMEM activation ping-pong buffers
    """
    f32 = jnp.float32
    Tp = T + 2 * pad

    # --- prologue -------------------------------------------------------------
    # ping (layer-0 source) must be fully defined on EVERY step: uninitialized
    # VMEM may hold NaN and 0*NaN would leak through the zero-padded weight rows,
    # and with a "parallel" batch grid each core's first step sees fresh scratch.
    # pong's interior is always fully written (all 128 lanes) before it is first
    # read, so only its 2*pad boundary bands need zeroing (was: full clear).
    ping[...] = jnp.zeros_like(ping)
    pong[0:pad, :] = jnp.zeros((pad, CPAD), f32)
    pong[pad + T:Tp, :] = jnp.zeros((pad, CPAD), f32)
    # raw input into ping's interior rows / leading c_in lanes
    ping[pad:pad + T, 0:c_in] = x_ref[...].astype(f32)

    bufs = (ping, pong)
    for layer in range(n_layers):
        src = bufs[layer % 2]
        dst = bufs[(layer + 1) % 2]
        last = layer == n_layers - 1
        bias = b_ref[layer, :, :]                       # (1, CPAD) f32

        # T-tiling: bounds the live f32 accumulator and lets EUP tanh of chunk t
        # overlap the MXU matmuls of chunk t+1 at production T.
        for t0 in range(0, T, t_chunk):
            tc = min(t_chunk, T - t0)
            acc = jnp.zeros((tc, CPAD), f32)
            for k in range(K):
                # bf16 x bf16 -> f32-accumulate MXU matmul.  'same' padding is
                # realized by the zeroed boundary rows of the source buffer.
                a = src[pl.ds(t0 + k, tc), :].astype(jnp.bfloat16)
                acc += jnp.dot(a, w_ref[layer, k, :, :],
                               preferred_element_type=f32)
            acc += bias
            if not last:
                # f32 tanh (EUP) + full-128-lane store -> unmasked vst
                dst[pad + t0:pad + t0 + tc, :] = jnp.tanh(acc)
            else:
                # final layer: no tanh; emit only the valid mel lanes
                o_ref[t0:t0 + tc, :] = acc[:, 0:c_out].astype(o_ref.dtype)


def postnet_pallas(x_nlc, w_stack, b_stack, n_mel_out):
    """x_nlc: (B, T, Cin) f32; w_stack: (L, K, CPAD, CPAD) bf16; b_stack: (L,1,CPAD) f32.

    Returns (B, T, n_mel_out) in NLC layout.
    """
    B, T, c_in = x_nlc.shape
    L, K = w_stack.shape[0], w_stack.shape[1]
    pad = (K - 1) // 2
    Tp = T + 2 * pad

    # Explicit VMEM budget from the actual buffer sizes (x2 for double buffering
    # of the pipelined operands) plus headroom — do not rely on the default
    # scoped limit (16/32 MiB) at larger dims.
    w_bytes = int(w_stack.size) * w_stack.dtype.itemsize
    b_bytes = int(b_stack.size) * b_stack.dtype.itemsize
    io_bytes = T * c_in * 4 + T * n_mel_out * 4
    scratch_bytes = 2 * Tp * CPAD * 4
    vmem_limit = int(2 * (w_bytes + b_bytes + io_bytes) + scratch_bytes + (8 << 20))

    kernel = functools.partial(
        _postnet_kernel, K=K, T=T, pad=pad, c_in=c_in, c_out=n_mel_out,
        n_layers=L, t_chunk=min(T_CHUNK, T))

    return pl.pallas_call(
        kernel,
        out_shape=jax.ShapeDtypeStruct((B, T, n_mel_out), x_nlc.dtype),
        grid=(B,),
        in_specs=[
            pl.BlockSpec((None, T, c_in), lambda i: (i, 0, 0)),        # x (squeeze B)
            # Constant index_map: weights/biases are DMA'd once and stay VMEM
            # resident across grid steps.  At production dims add
            # pipeline_mode=pl.Buffered(1) (or stream per layer) for v7x 64 MiB.
            pl.BlockSpec((L, K, CPAD, CPAD), lambda i: (0, 0, 0, 0)),  # bf16 weights
            pl.BlockSpec((L, 1, CPAD), lambda i: (0, 0, 0)),           # f32 biases
        ],
        out_specs=pl.BlockSpec((None, T, n_mel_out), lambda i: (i, 0, 0)),
        scratch_shapes=[pltpu.VMEM((Tp, CPAD), jnp.float32),           # ping
                        pltpu.VMEM((Tp, CPAD), jnp.float32)],          # pong
        compiler_params=pltpu.CompilerParams(
            dimension_semantics=("parallel",),      # v7x: one batch element / TC
            vmem_limit_bytes=vmem_limit),
    )(x_nlc, w_stack, b_stack)


# --------------------------- parameter plumbing ------------------------------

def fold_bn(w, b, gamma, beta, mean, var, eps=1e-5):
    """Fold eval-mode BatchNorm1d into conv weight (K, Cin, Cout) and bias."""
    scale = gamma / jnp.sqrt(var + eps)
    return w * scale[None, None, :], (b - mean) * scale + beta


def make_postnet_params(key, n_mel, emb, kernel_size, n_convs):
    """Deterministic synthetic parameters (shapes match the PyTorch module)."""
    layers = []
    dims = [n_mel] + [emb] * (n_convs - 1) + [n_mel]
    for i in range(n_convs):
        cin, cout = dims[i], dims[i + 1]
        key, kw, kb, kg, kbeta, km, kv = jax.random.split(key, 7)
        # conv weight in (K, Cin, Cout) layout == torch (Cout, Cin, K).transpose(2,1,0)
        w = jax.random.normal(kw, (kernel_size, cin, cout), jnp.float32) * 0.05
        b = jax.random.normal(kb, (cout,), jnp.float32) * 0.05
        gamma = 1.0 + 0.1 * jax.random.normal(kg, (cout,), jnp.float32)
        beta = 0.1 * jax.random.normal(kbeta, (cout,), jnp.float32)
        mean = 0.1 * jax.random.normal(km, (cout,), jnp.float32)
        var = jnp.abs(jax.random.normal(kv, (cout,), jnp.float32)) + 0.5
        wf, bf = fold_bn(w, b, gamma, beta, mean, var)
        layers.append((wf, bf))
    return layers


def pack_params(layers):
    """Zero-pad channels to CPAD and stack.

    Weights are stored bf16 (MXU operands); biases stay f32 (added in f32).
    """
    K = layers[0][0].shape[0]
    L = len(layers)
    w_stack = jnp.zeros((L, K, CPAD, CPAD), jnp.float32)
    b_stack = jnp.zeros((L, 1, CPAD), jnp.float32)
    for i, (w, b) in enumerate(layers):
        cin, cout = w.shape[1], w.shape[2]
        w_stack = w_stack.at[i, :, :cin, :cout].set(w)
        b_stack = b_stack.at[i, 0, :cout].set(b)
    return w_stack.astype(jnp.bfloat16), b_stack


# ------------------------------ entry points ---------------------------------

@jax.jit
def postnet_forward_nlc(x_nlc, w_stack, b_stack):
    """Production entry point: NLC (B, T, n_mel) in / out — zero wrapper layout ops."""
    return postnet_pallas(x_nlc, w_stack, b_stack, x_nlc.shape[-1])


@jax.jit
def postnet_forward(x_ncl, w_stack, b_stack):
    """PyTorch-compatible interface: NCL (B, n_mel, T) in / out.

    NOTE (perf review): the two transposes below are wrapper-side HBM round
    trips; in a real model keep the surrounding graph in NLC and call
    postnet_forward_nlc directly.
    """
    n_mel = x_ncl.shape[1]
    x_nlc = jnp.transpose(x_ncl, (0, 2, 1))                 # NCL -> NLC
    out_nlc = postnet_pallas(x_nlc, w_stack, b_stack, n_mel)
    return jnp.transpose(out_nlc, (0, 2, 1))                # NLC -> NCL


# ------------------------------- references -----------------------------------

def postnet_reference_f32(x_ncl, layers):
    """Pure-f32 semantic reference (matches the PyTorch module math)."""
    x = jnp.transpose(x_ncl, (0, 2, 1))
    n = len(layers)
    for i, (w, b) in enumerate(layers):
        K = w.shape[0]
        pad = (K - 1) // 2
        xp = jnp.pad(x, ((0, 0), (pad, pad), (0, 0)))
        T = x.shape[1]
        acc = sum(jnp.einsum("btc,cd->btd", xp[:, k:k + T, :], w[k])
                  for k in range(K)) + b
        x = jnp.tanh(acc) if i < n - 1 else acc
    return jnp.transpose(x, (0, 2, 1))


def postnet_reference_bf16(x_ncl, w_stack, b_stack, n_mel):
    """Emulates the kernel arithmetic exactly (channel padding, bf16 MXU
    operands, f32 accumulate / bias / tanh) for a tight numerical check."""
    L, K = w_stack.shape[0], w_stack.shape[1]
    pad = (K - 1) // 2
    x = jnp.transpose(x_ncl, (0, 2, 1))                          # (B, T, c)
    x = jnp.pad(x, ((0, 0), (0, 0), (0, CPAD - x.shape[2])))     # pad lanes
    B, T, _ = x.shape
    for layer in range(L):
        xp = jnp.pad(x, ((0, 0), (pad, pad), (0, 0)))
        acc = jnp.zeros((B, T, CPAD), jnp.float32)
        for k in range(K):
            a = xp[:, k:k + T, :].astype(jnp.bfloat16)
            acc = acc + jnp.einsum("btc,cd->btd", a, w_stack[layer, k],
                                   preferred_element_type=jnp.float32)
        acc = acc + b_stack[layer]
        x = jnp.tanh(acc) if layer < L - 1 else acc
    return jnp.transpose(x[:, :, :n_mel], (0, 2, 1))


# --------------------------------- main ---------------------------------------

if __name__ == "__main__":
    # hparams (small): n_mel_channels=16, postnet_embedding_dim=32,
    # postnet_kernel_size=5, postnet_n_convolutions=5
    B, N_MEL, T = 2, 16, 24
    EMB, KSIZE, NCONV = 32, 5, 5

    key = jax.random.PRNGKey(0)
    key, kx = jax.random.split(key)
    x = jax.random.normal(kx, (B, N_MEL, T), jnp.float32)     # NCL like PyTorch

    layers = make_postnet_params(key, N_MEL, EMB, KSIZE, NCONV)
    w_stack, b_stack = pack_params(layers)

    out = postnet_forward(x, w_stack, b_stack)
    out = jax.block_until_ready(out)
    assert out.shape == (B, N_MEL, T), out.shape

    # tight check against a reference that mirrors the kernel's bf16-operand math
    ref_bf16 = postnet_reference_bf16(x, w_stack, b_stack, N_MEL)
    assert jnp.allclose(out, ref_bf16, atol=5e-3, rtol=5e-3), \
        "mismatch vs bf16-operand reference"

    # loose check against the pure-f32 module semantics (bf16 rounding tolerance)
    ref_f32 = postnet_reference_f32(x, layers)
    assert jnp.allclose(out, ref_f32, atol=5e-2, rtol=5e-2), \
        "mismatch vs f32 reference"

    print("KERNEL_OK")
</pallas_src>

<mosaic_0001>
module attributes {stable_mosaic.version = 11 : i64} {
  func.func @_postnet_kernel(%arg0: i32, %arg1: memref<1x24x16xf32, #tpu.memory_space<vmem>>, %arg2: memref<5x5x128x128xbf16, #tpu.memory_space<vmem>>, %arg3: memref<5x1x128xf32, #tpu.memory_space<vmem>>, %arg4: memref<1x24x16xf32, #tpu.memory_space<vmem>>, %arg5: memref<28x128xf32, #tpu.memory_space<vmem>>, %arg6: memref<28x128xf32, #tpu.memory_space<vmem>>) attributes {dimension_semantics = [#tpu.dimension_semantics<parallel>], iteration_bounds = array<i64: 2>, scalar_prefetch = 0 : i64, scratch_operands = 2 : i64, tpu.core_type = #tpu.core_type<tc>, window_params = [{transform_indices = @transform_0, window_bounds = array<i64: 1, 24, 16>}, {pipeline_mode = #tpu.pipeline_mode<synchronous>, transform_indices = @transform_1, window_bounds = array<i64: 5, 5, 128, 128>}, {pipeline_mode = #tpu.pipeline_mode<synchronous>, transform_indices = @transform_2, window_bounds = array<i64: 5, 1, 128>}, {transform_indices = @transform_3, window_bounds = array<i64: 1, 24, 16>}]} {
    %cst = arith.constant 0.000000e+00 : f32
    %0 = vector.broadcast %cst : f32 to vector<28x128xf32>
    %c0 = arith.constant 0 : index
    %c0_0 = arith.constant 0 : index
    %1 = vector.load %arg5[%c0, %c0_0] : memref<28x128xf32, #tpu.memory_space<vmem>>, vector<28x128xf32>
    tpu.vector_store %arg5[%c0, %c0_0], %0 {strides = array<i32>} : memref<28x128xf32, #tpu.memory_space<vmem>>, vector<28x128xf32>,
    %cst_1 = arith.constant 0.000000e+00 : f32
    %2 = vector.broadcast %cst_1 : f32 to vector<2x128xf32>
    %c0_2 = arith.constant 0 : index
    %c0_3 = arith.constant 0 : index
    %3 = vector.load %arg6[%c0_2, %c0_3] : memref<28x128xf32, #tpu.memory_space<vmem>>, vector<2x128xf32>
    tpu.vector_store %arg6[%c0_2, %c0_3], %2 {strides = array<i32>} : memref<28x128xf32, #tpu.memory_space<vmem>>, vector<2x128xf32>,
    %cst_4 = arith.constant 0.000000e+00 : f32
    %4 = vector.broadcast %cst_4 : f32 to vector<2x128xf32>
    %c26 = arith.constant 26 : index
    %c0_5 = arith.constant 0 : index
    %5 = vector.load %arg6[%c26, %c0_5] : memref<28x128xf32, #tpu.memory_space<vmem>>, vector<2x128xf32>
    tpu.vector_store %arg6[%c26, %c0_5], %4 {strides = array<i32>} : memref<28x128xf32, #tpu.memory_space<vmem>>, vector<2x128xf32>,
    %c0_6 = arith.constant 0 : index
    %c0_7 = arith.constant 0 : index
    %c0_8 = arith.constant 0 : index
    %6 = vector.load %arg1[%c0_6, %c0_7, %c0_8] : memref<1x24x16xf32, #tpu.memory_space<vmem>>, vector<1x24x16xf32>
    %7 = vector.shape_cast %6 : vector<1x24x16xf32> to vector<24x16xf32>
    %c2 = arith.constant 2 : index
    %c0_9 = arith.constant 0 : index
    %8 = vector.load %arg5[%c2, %c0_9] : memref<28x128xf32, #tpu.memory_space<vmem>>, vector<24x16xf32>
    tpu.vector_store %arg5[%c2, %c0_9], %7 {strides = array<i32>} : memref<28x128xf32, #tpu.memory_space<vmem>>, vector<24x16xf32>,
    %c0_10 = arith.constant 0 : index
    %c0_11 = arith.constant 0 : index
    %c0_12 = arith.constant 0 : index
    %9 = vector.load %arg3[%c0_10, %c0_11, %c0_12] : memref<5x1x128xf32, #tpu.memory_space<vmem>>, vector<1x1x128xf32>
    %10 = vector.shape_cast %9 : vector<1x1x128xf32> to vector<1x128xf32>
    %cst_13 = arith.constant 0.000000e+00 : f32
    %11 = vector.broadcast %cst_13 : f32 to vector<24x128xf32>
    %c0_14 = arith.constant 0 : index
    %c0_15 = arith.constant 0 : index
    %12 = vector.load %arg5[%c0_14, %c0_15] : memref<28x128xf32, #tpu.memory_space<vmem>>, vector<24x128xf32>
    %13 = arith.truncf %12 : vector<24x128xf32> to vector<24x128xbf16>
    %c0_16 = arith.constant 0 : index
    %c0_17 = arith.constant 0 : index
    %c0_18 = arith.constant 0 : index
    %c0_19 = arith.constant 0 : index
    %14 = vector.load %arg2[%c0_16, %c0_17, %c0_18, %c0_19] : memref<5x5x128x128xbf16, #tpu.memory_space<vmem>>, vector<1x1x128x128xbf16>
    %15 = vector.shape_cast %14 : vector<1x1x128x128xbf16> to vector<128x128xbf16>
    %cst_20 = arith.constant dense<0.000000e+00> : vector<24x128xf32>
    %16 = tpu.matmul %13, %15, %cst_20 {dimension_numbers = #tpu.dot_dimension_numbers<[1], [0], [0], [1], [0, 0, 1, 1], [], []>} : vector<24x128xbf16>, vector<128x128xbf16>, vector<24x128xf32> -> vector<24x128xf32>
    %17 = arith.addf %11, %16 : vector<24x128xf32>
    %c1 = arith.constant 1 : index
    %c0_21 = arith.constant 0 : index
    %18 = vector.load %arg5[%c1, %c0_21] : memref<28x128xf32, #tpu.memory_space<vmem>>, vector<24x128xf32>
    %19 = arith.truncf %18 : vector<24x128xf32> to vector<24x128xbf16>
    %c0_22 = arith.constant 0 : index
    %c1_23 = arith.constant 1 : index
    %c0_24 = arith.constant 0 : index
    %c0_25 = arith.constant 0 : index
    %20 = vector.load %arg2[%c0_22, %c1_23, %c0_24, %c0_25] : memref<5x5x128x128xbf16, #tpu.memory_space<vmem>>, vector<1x1x128x128xbf16>
    %21 = vector.shape_cast %20 : vector<1x1x128x128xbf16> to vector<128x128xbf16>
    %cst_26 = arith.constant dense<0.000000e+00> : vector<24x128xf32>
    %22 = tpu.matmul %19, %21, %cst_26 {dimension_numbers = #tpu.dot_dimension_numbers<[1], [0], [0], [1], [0, 0, 1, 1], [], []>} : vector<24x128xbf16>, vector<128x128xbf16>, vector<24x128xf32> -> vector<24x128xf32>
    %23 = arith.addf %17, %22 : vector<24x128xf32>
    %c2_27 = arith.constant 2 : index
    %c0_28 = arith.constant 0 : index
    %24 = vector.load %arg5[%c2_27, %c0_28] : memref<28x128xf32, #tpu.memory_space<vmem>>, vector<24x128xf32>
    %25 = arith.truncf %24 : vector<24x128xf32> to vector<24x128xbf16>
    %c0_29 = arith.constant 0 : index
    %c2_30 = arith.constant 2 : index
    %c0_31 = arith.constant 0 : index
    %c0_32 = arith.constant 0 : index
    %26 = vector.load %arg2[%c0_29, %c2_30, %c0_31, %c0_32] : memref<5x5x128x128xbf16, #tpu.memory_space<vmem>>, vector<1x1x128x128xbf16>
    %27 = vector.shape_cast %26 : vector<1x1x128x128xbf16> to vector<128x128xbf16>
    %cst_33 = arith.constant dense<0.000000e+00> : vector<24x128xf32>
    %28 = tpu.matmul %25, %27, %cst_33 {dimension_numbers = #tpu.dot_dimension_numbers<[1], [0], [0], [1], [0, 0, 1, 1], [], []>} : vector<24x128xbf16>, vector<128x128xbf16>, vector<24x128xf32> -> vector<24x128xf32>
    %29 = arith.addf %23, %28 : vector<24x128xf32>
    %c3 = arith.constant 3 : index
    %c0_34 = arith.constant 0 : index
    %30 = vector.load %arg5[%c3, %c0_34] : memref<28x128xf32, #tpu.memory_space<vmem>>, vector<24x128xf32>
    %31 = arith.truncf %30 : vector<24x128xf32> to vector<24x128xbf16>
    %c0_35 = arith.constant 0 : index
    %c3_36 = arith.constant 3 : index
    %c0_37 = arith.constant 0 : index
    %c0_38 = arith.constant 0 : index
    %32 = vector.load %arg2[%c0_35, %c3_36, %c0_37, %c0_38] : memref<5x5x128x128xbf16, #tpu.memory_space<vmem>>, vector<1x1x128x128xbf16>
    %33 = vector.shape_cast %32 : vector<1x1x128x128xbf16> to vector<128x128xbf16>
    %cst_39 = arith.constant dense<0.000000e+00> : vector<24x128xf32>
    %34 = tpu.matmul %31, %33, %cst_39 {dimension_numbers = #tpu.dot_dimension_numbers<[1], [0], [0], [1], [0, 0, 1, 1], [], []>} : vector<24x128xbf16>, vector<128x128xbf16>, vector<24x128xf32> -> vector<24x128xf32>
    %35 = arith.addf %29, %34 : vector<24x128xf32>
    %c4 = arith.constant 4 : index
    %c0_40 = arith.constant 0 : index
    %36 = vector.load %arg5[%c4, %c0_40] : memref<28x128xf32, #tpu.memory_space<vmem>>, vector<24x128xf32>
    %37 = arith.truncf %36 : vector<24x128xf32> to vector<24x128xbf16>
    %c0_41 = arith.constant 0 : index
    %c4_42 = arith.constant 4 : index
    %c0_43 = arith.constant 0 : index
    %c0_44 = arith.constant 0 : index
    %38 = vector.load %arg2[%c0_41, %c4_42, %c0_43, %c0_44] : memref<5x5x128x128xbf16, #tpu.memory_space<vmem>>, vector<1x1x128x128xbf16>
    %39 = vector.shape_cast %38 : vector<1x1x128x128xbf16> to vector<128x128xbf16>
    %cst_45 = arith.constant dense<0.000000e+00> : vector<24x128xf32>
    %40 = tpu.matmul %37, %39, %cst_45 {dimension_numbers = #tpu.dot_dimension_numbers<[1], [0], [0], [1], [0, 0, 1, 1], [], []>} : vector<24x128xbf16>, vector<128x128xbf16>, vector<24x128xf32> -> vector<24x128xf32>
    %41 = arith.addf %35, %40 : vector<24x128xf32>
    %42 = vector.broadcast %10 : vector<1x128xf32> to vector<24x128xf32>
    %43 = arith.addf %41, %42 : vector<24x128xf32>
    %44 = math.tanh %43 : vector<24x128xf32>
    %c2_46 = arith.constant 2 : index
    %c0_47 = arith.constant 0 : index
    %45 = vector.load %arg6[%c2_46, %c0_47] : memref<28x128xf32, #tpu.memory_space<vmem>>, vector<24x128xf32>
    tpu.vector_store %arg6[%c2_46, %c0_47], %44 {strides = array<i32>} : memref<28x128xf32, #tpu.memory_space<vmem>>, vector<24x128xf32>,
    %c1_48 = arith.constant 1 : index
    %c0_49 = arith.constant 0 : index
    %c0_50 = arith.constant 0 : index
    %46 = vector.load %arg3[%c1_48, %c0_49, %c0_50] : memref<5x1x128xf32, #tpu.memory_space<vmem>>, vector<1x1x128xf32>
    %47 = vector.shape_cast %46 : vector<1x1x128xf32> to vector<1x128xf32>
    %cst_51 = arith.constant 0.000000e+00 : f32
    %48 = vector.broadcast %cst_51 : f32 to vector<24x128xf32>
    %c0_52 = arith.constant 0 : index
    %c0_53 = arith.constant 0 : index
    %49 = vector.load %arg6[%c0_52, %c0_53] : memref<28x128xf32, #tpu.memory_space<vmem>>, vector<24x128xf32>
    %50 = arith.truncf %49 : vector<24x128xf32> to vector<24x128xbf16>
    %c1_54 = arith.constant 1 : index
    %c0_55 = arith.constant 0 : index
    %c0_56 = arith.constant 0 : index
    %c0_57 = arith.constant 0 : index
    %51 = vector.load %arg2[%c1_54, %c0_55, %c0_56, %c0_57] : memref<5x5x128x128xbf16, #tpu.memory_space<vmem>>, vector<1x1x128x128xbf16>
    %52 = vector.shape_cast %51 : vector<1x1x128x128xbf16> to vector<128x128xbf16>
    %cst_58 = arith.constant dense<0.000000e+00> : vector<24x128xf32>
    %53 = tpu.matmul %50, %52, %cst_58 {dimension_numbers = #tpu.dot_dimension_numbers<[1], [0], [0], [1], [0, 0, 1, 1], [], []>} : vector<24x128xbf16>, vector<128x128xbf16>, vector<24x128xf32> -> vector<24x128xf32>
    %54 = arith.addf %48, %53 : vector<24x128xf32>
    %c1_59 = arith.constant 1 : index
    %c0_60 = arith.constant 0 : index
    %55 = vector.load %arg6[%c1_59, %c0_60] : memref<28x128xf32, #tpu.memory_space<vmem>>, vector<24x128xf32>
    %56 = arith.truncf %55 : vector<24x128xf32> to vector<24x128xbf16>
    %c1_61 = arith.constant 1 : index
    %c1_62 = arith.constant 1 : index
    %c0_63 = arith.constant 0 : index
    %c0_64 = arith.constant 0 : index
    %57 = vector.load %arg2[%c1_61, %c1_62, %c0_63, %c0_64] : memref<5x5x128x128xbf16, #tpu.memory_space<vmem>>, vector<1x1x128x128xbf16>
    %58 = vector.shape_cast %57 : vector<1x1x128x128xbf16> to vector<128x128xbf16>
    %cst_65 = arith.constant dense<0.000000e+00> : vector<24x128xf32>
    %59 = tpu.matmul %56, %58, %cst_65 {dimension_numbers = #tpu.dot_dimension_numbers<[1], [0], [0], [1], [0, 0, 1, 1], [], []>} : vector<24x128xbf16>, vector<128x128xbf16>, vector<24x128xf32> -> vector<24x128xf32>
    %60 = arith.addf %54, %59 : vector<24x128xf32>
    %c2_66 = arith.constant 2 : index
    %c0_67 = arith.constant 0 : index
    %61 = vector.load %arg6[%c2_66, %c0_67] : memref<28x128xf32, #tpu.memory_space<vmem>>, vector<24x128xf32>
    %62 = arith.truncf %61 : vector<24x128xf32> to vector<24x128xbf16>
    %c1_68 = arith.constant 1 : index
    %c2_69 = arith.constant 2 : index
    %c0_70 = arith.constant 0 : index
    %c0_71 = arith.constant 0 : index
    %63 = vector.load %arg2[%c1_68, %c2_69, %c0_70, %c0_71] : memref<5x5x128x128xbf16, #tpu.memory_space<vmem>>, vector<1x1x128x128xbf16>
    %64 = vector.shape_cast %63 : vector<1x1x128x128xbf16> to vector<128x128xbf16>
    %cst_72 = arith.constant dense<0.000000e+00> : vector<24x128xf32>
    %65 = tpu.matmul %62, %64, %cst_72 {dimension_numbers = #tpu.dot_dimension_numbers<[1], [0], [0], [1], [0, 0, 1, 1], [], []>} : vector<24x128xbf16>, vector<128x128xbf16>, vector<24x128xf32> -> vector<24x128xf32>
    %66 = arith.addf %60, %65 : vector<24x128xf32>
    %c3_73 = arith.constant 3 : index
    %c0_74 = arith.constant 0 : index
    %67 = vector.load %arg6[%c3_73, %c0_74] : memref<28x128xf32, #tpu.memory_space<vmem>>, vector<24x128xf32>
    %68 = arith.truncf %67 : vector<24x128xf32> to vector<24x128xbf16>
    %c1_75 = arith.constant 1 : index
    %c3_76 = arith.constant 3 : index
    %c0_77 = arith.constant 0 : index
    %c0_78 = arith.constant 0 : index
    %69 = vector.load %arg2[%c1_75, %c3_76, %c0_77, %c0_78] : memref<5x5x128x128xbf16, #tpu.memory_space<vmem>>, vector<1x1x128x128xbf16>
    %70 = vector.shape_cast %69 : vector<1x1x128x128xbf16> to vector<128x128xbf16>
    %cst_79 = arith.constant dense<0.000000e+00> : vector<24x128xf32>
    %71 = tpu.matmul %68, %70, %cst_79 {dimension_numbers = #tpu.dot_dimension_numbers<[1], [0], [0], [1], [0, 0, 1, 1], [], []>} : vector<24x128xbf16>, vector<128x128xbf16>, vector<24x128xf32> -> vector<24x128xf32>
    %72 = arith.addf %66, %71 : vector<24x128xf32>
    %c4_80 = arith.constant 4 : index
    %c0_81 = arith.constant 0 : index
    %73 = vector.load %arg6[%c4_80, %c0_81] : memref<28x128xf32, #tpu.memory_space<vmem>>, vector<24x128xf32>
    %74 = arith.truncf %73 : vector<24x128xf32> to vector<24x128xbf16>
    %c1_82 = arith.constant 1 : index
    %c4_83 = arith.constant 4 : index
    %c0_84 = arith.constant 0 : index
    %c0_85 = arith.constant 0 : index
    %75 = vector.load %arg2[%c1_82, %c4_83, %c0_84, %c0_85] : memref<5x5x128x128xbf16, #tpu.memory_space<vmem>>, vector<1x1x128x128xbf16>
    %76 = vector.shape_cast %75 : vector<1x1x128x128xbf16> to vector<128x128xbf16>
    %cst_86 = arith.constant dense<0.000000e+00> : vector<24x128xf32>
    %77 = tpu.matmul %74, %76, %cst_86 {dimension_numbers = #tpu.dot_dimension_numbers<[1], [0], [0], [1], [0, 0, 1, 1], [], []>} : vector<24x128xbf16>, vector<128x128xbf16>, vector<24x128xf32> -> vector<24x128xf32>
    %78 = arith.addf %72, %77 : vector<24x128xf32>
    %79 = vector.broadcast %47 : vector<1x128xf32> to vector<24x128xf32>
    %80 = arith.addf %78, %79 : vector<24x128xf32>
    %81 = math.tanh %80 : vector<24x128xf32>
    %c2_87 = arith.constant 2 : index
    %c0_88 = arith.constant 0 : index
    %82 = vector.load %arg5[%c2_87, %c0_88] : memref<28x128xf32, #tpu.memory_space<vmem>>, vector<24x128xf32>
    tpu.vector_store %arg5[%c2_87, %c0_88], %81 {strides = array<i32>} : memref<28x128xf32, #tpu.memory_space<vmem>>, vector<24x128xf32>,
    %c2_89 = arith.constant 2 : index
    %c0_90 = arith.constant 0 : index
    %c0_91 = arith.constant 0 : index
    %83 = vector.load %arg3[%c2_89, %c0_90, %c0_91] : memref<5x1x128xf32, #tpu.memory_space<vmem>>, vector<1x1x128xf32>
    %84 = vector.shape_cast %83 : vector<1x1x128xf32> to vector<1x128xf32>
    %cst_92 = arith.constant 0.000000e+00 : f32
    %85 = vector.broadcast %cst_92 : f32 to vector<24x128xf32>
    %c0_93 = arith.constant 0 : index
    %c0_94 = arith.constant 0 : index
    %86 = vector.load %arg5[%c0_93, %c0_94] : memref<28x128xf32, #tpu.memory_space<vmem>>, vector<24x128xf32>
    %87 = arith.truncf %86 : vector<24x128xf32> to vector<24x128xbf16>
    %c2_95 = arith.constant 2 : index
    %c0_96 = arith.constant 0 : index
    %c0_97 = arith.constant 0 : index
    %c0_98 = arith.constant 0 : index
    %88 = vector.load %arg2[%c2_95, %c0_96, %c0_97, %c0_98] : memref<5x5x128x128xbf16, #tpu.memory_space<vmem>>, vector<1x1x128x128xbf16>
    %89 = vector.shape_cast %88 : vector<1x1x128x128xbf16> to vector<128x128xbf16>
    %cst_99 = arith.constant dense<0.000000e+00> : vector<24x128xf32>
    %90 = tpu.matmul %87, %89, %cst_99 {dimension_numbers = #tpu.dot_dimension_numbers<[1], [0], [0], [1], [0, 0, 1, 1], [], []>} : vector<24x128xbf16>, vector<128x128xbf16>, vector<24x128xf32> -> vector<24x128xf32>
    %91 = arith.addf %85, %90 : vector<24x128xf32>
    %c1_100 = arith.constant 1 : index
    %c0_101 = arith.constant 0 : index
    %92 = vector.load %arg5[%c1_100, %c0_101] : memref<28x128xf32, #tpu.memory_space<vmem>>, vector<24x128xf32>
    %93 = arith.truncf %92 : vector<24x128xf32> to vector<24x128xbf16>
    %c2_102 = arith.constant 2 : index
    %c1_103 = arith.constant 1 : index
    %c0_104 = arith.constant 0 : index
    %c0_105 = arith.constant 0 : index
    %94 = vector.load %arg2[%c2_102, %c1_103, %c0_104, %c0_105] : memref<5x5x128x128xbf16, #tpu.memory_space<vmem>>, vector<1x1x128x128xbf16>
    %95 = vector.shape_cast %94 : vector<1x1x128x128xbf16> to vector<128x128xbf16>
    %cst_106 = arith.constant dense<0.000000e+00> : vector<24x128xf32>
    %96 = tpu.matmul %93, %95, %cst_106 {dimension_numbers = #tpu.dot_dimension_numbers<[1], [0], [0], [1], [0, 0, 1, 1], [], []>} : vector<24x128xbf16>, vector<128x128xbf16>, vector<24x128xf32> -> vector<24x128xf32>
    %97 = arith.addf %91, %96 : vector<24x128xf32>
    %c2_107 = arith.constant 2 : index
    %c0_108 = arith.constant 0 : index
    %98 = vector.load %arg5[%c2_107, %c0_108] : memref<28x128xf32, #tpu.memory_space<vmem>>, vector<24x128xf32>
    %99 = arith.truncf %98 : vector<24x128xf32> to vector<24x128xbf16>
    %c2_109 = arith.constant 2 : index
    %c2_110 = arith.constant 2 : index
    %c0_111 = arith.constant 0 : index
    %c0_112 = arith.constant 0 : index
    %100 = vector.load %arg2[%c2_109, %c2_110, %c0_111, %c0_112] : memref<5x5x128x128xbf16, #tpu.memory_space<vmem>>, vector<1x1x128x128xbf16>
    %101 = vector.shape_cast %100 : vector<1x1x128x128xbf16> to vector<128x128xbf16>
    %cst_113 = arith.constant dense<0.000000e+00> : vector<24x128xf32>
    %102 = tpu.matmul %99, %101, %cst_113 {dimension_numbers = #tpu.dot_dimension_numbers<[1], [0], [0], [1], [0, 0, 1, 1], [], []>} : vector<24x128xbf16>, vector<128x128xbf16>, vector<24x128xf32> -> vector<24x128xf32>
    %103 = arith.addf %97, %102 : vector<24x128xf32>
    %c3_114 = arith.constant 3 : index
    %c0_115 = arith.constant 0 : index
    %104 = vector.load %arg5[%c3_114, %c0_115] : memref<28x128xf32, #tpu.memory_space<vmem>>, vector<24x128xf32>
    %105 = arith.truncf %104 : vector<24x128xf32> to vector<24x128xbf16>
    %c2_116 = arith.constant 2 : index
    %c3_117 = arith.constant 3 : index
    %c0_118 = arith.constant 0 : index
    %c0_119 = arith.constant 0 : index
    %106 = vector.load %arg2[%c2_116, %c3_117, %c0_118, %c0_119] : memref<5x5x128x128xbf16, #tpu.memory_space<vmem>>, vector<1x1x128x128xbf16>
    %107 = vector.shape_cast %106 : vector<1x1x128x128xbf16> to vector<128x128xbf16>
    %cst_120 = arith.constant dense<0.000000e+00> : vector<24x128xf32>
    %108 = tpu.matmul %105, %107, %cst_120 {dimension_numbers = #tpu.dot_dimension_numbers<[1], [0], [0], [1], [0, 0, 1, 1], [], []>} : vector<24x128xbf16>, vector<128x128xbf16>, vector<24x128xf32> -> vector<24x128xf32>
    %109 = arith.addf %103, %108 : vector<24x128xf32>
    %c4_121 = arith.constant 4 : index
    %c0_122 = arith.constant 0 : index
    %110 = vector.load %arg5[%c4_121, %c0_122] : memref<28x128xf32, #tpu.memory_space<vmem>>, vector<24x128xf32>
    %111 = arith.truncf %110 : vector<24x128xf32> to vector<24x128xbf16>
    %c2_123 = arith.constant 2 : index
    %c4_124 = arith.constant 4 : index
    %c0_125 = arith.constant 0 : index
    %c0_126 = arith.constant 0 : index
    %112 = vector.load %arg2[%c2_123, %c4_124, %c0_125, %c0_126] : memref<5x5x128x128xbf16, #tpu.memory_space<vmem>>, vector<1x1x128x128xbf16>
    %113 = vector.shape_cast %112 : vector<1x1x128x128xbf16> to vector<128x128xbf16>
    %cst_127 = arith.constant dense<0.000000e+00> : vector<24x128xf32>
    %114 = tpu.matmul %111, %113, %cst_127 {dimension_numbers = #tpu.dot_dimension_numbers<[1], [0], [0], [1], [0, 0, 1, 1], [], []>} : vector<24x128xbf16>, vector<128x128xbf16>, vector<24x128xf32> -> vector<24x128xf32>
    %115 = arith.addf %109, %114 : vector<24x128xf32>
    %116 = vector.broadcast %84 : vector<1x128xf32> to vector<24x128xf32>
    %117 = arith.addf %115, %116 : vector<24x128xf32>
    %118 = math.tanh %117 : vector<24x128xf32>
    %c2_128 = arith.constant 2 : index
    %c0_129 = arith.constant 0 : index
    %119 = vector.load %arg6[%c2_128, %c0_129] : memref<28x128xf32, #tpu.memory_space<vmem>>, vector<24x128xf32>
    tpu.vector_store %arg6[%c2_128, %c0_129], %118 {strides = array<i32>} : memref<28x128xf32, #tpu.memory_space<vmem>>, vector<24x128xf32>,
    %c3_130 = arith.constant 3 : index
    %c0_131 = arith.constant 0 : index
    %c0_132 = arith.constant 0 : index
    %120 = vector.load %arg3[%c3_130, %c0_131, %c0_132] : memref<5x1x128xf32, #tpu.memory_space<vmem>>, vector<1x1x128xf32>
    %121 = vector.shape_cast %120 : vector<1x1x128xf32> to vector<1x128xf32>
    %cst_133 = arith.constant 0.000000e+00 : f32
    %122 = vector.broadcast %cst_133 : f32 to vector<24x128xf32>
    %c0_134 = arith.constant 0 : index
    %c0_135 = arith.constant 0 : index
    %123 = vector.load %arg6[%c0_134, %c0_135] : memref<28x128xf32, #tpu.memory_space<vmem>>, vector<24x128xf32>
    %124 = arith.truncf %123 : vector<24x128xf32> to vector<24x128xbf16>
    %c3_136 = arith.constant 3 : index
    %c0_137 = arith.constant 0 : index
    %c0_138 = arith.constant 0 : index
    %c0_139 = arith.constant 0 : index
    %125 = vector.load %arg2[%c3_136, %c0_137, %c0_138, %c0_139] : memref<5x5x128x128xbf16, #tpu.memory_space<vmem>>, vector<1x1x128x128xbf16>
    %126 = vector.shape_cast %125 : vector<1x1x128x128xbf16> to vector<128x128xbf16>
    %cst_140 = arith.constant dense<0.000000e+00> : vector<24x128xf32>
    %127 = tpu.matmul %124, %126, %cst_140 {dimension_numbers = #tpu.dot_dimension_numbers<[1], [0], [0], [1], [0, 0, 1, 1], [], []>} : vector<24x128xbf16>, vector<128x128xbf16>, vector<24x128xf32> -> vector<24x128xf32>
    %128 = arith.addf %122, %127 : vector<24x128xf32>
    %c1_141 = arith.constant 1 : index
    %c0_142 = arith.constant 0 : index
    %129 = vector.load %arg6[%c1_141, %c0_142] : memref<28x128xf32, #tpu.memory_space<vmem>>, vector<24x128xf32>
    %130 = arith.truncf %129 : vector<24x128xf32> to vector<24x128xbf16>
    %c3_143 = arith.constant 3 : index
    %c1_144 = arith.constant 1 : index
    %c0_145 = arith.constant 0 : index
    %c0_146 = arith.constant 0 : index
    %131 = vector.load %arg2[%c3_143, %c1_144, %c0_145, %c0_146] : memref<5x5x128x128xbf16, #tpu.memory_space<vmem>>, vector<1x1x128x128xbf16>
    %132 = vector.shape_cast %131 : vector<1x1x128x128xbf16> to vector<128x128xbf16>
    %cst_147 = arith.constant dense<0.000000e+00> : vector<24x128xf32>
    %133 = tpu.matmul %130, %132, %cst_147 {dimension_numbers = #tpu.dot_dimension_numbers<[1], [0], [0], [1], [0, 0, 1, 1], [], []>} : vector<24x128xbf16>, vector<128x128xbf16>, vector<24x128xf32> -> vector<24x128xf32>
    %134 = arith.addf %128, %133 : vector<24x128xf32>
    %c2_148 = arith.constant 2 : index
    %c0_149 = arith.constant 0 : index
    %135 = vector.load %arg6[%c2_148, %c0_149] : memref<28x128xf32, #tpu.memory_space<vmem>>, vector<24x128xf32>
    %136 = arith.truncf %135 : vector<24x128xf32> to vector<24x128xbf16>
    %c3_150 = arith.constant 3 : index
    %c2_151 = arith.constant 2 : index
    %c0_152 = arith.constant 0 : index
    %c0_153 = arith.constant 0 : index
    %137 = vector.load %arg2[%c3_150, %c2_151, %c0_152, %c0_153] : memref<5x5x128x128xbf16, #tpu.memory_space<vmem>>, vector<1x1x128x128xbf16>
    %138 = vector.shape_cast %137 : vector<1x1x128x128xbf16> to vector<128x128xbf16>
    %cst_154 = arith.constant dense<0.000000e+00> : vector<24x128xf32>
    %139 = tpu.matmul %136, %138, %cst_154 {dimension_numbers = #tpu.dot_dimension_numbers<[1], [0], [0], [1], [0, 0, 1, 1], [], []>} : vector<24x128xbf16>, vector<128x128xbf16>, vector<24x128xf32> -> vector<24x128xf32>
    %140 = arith.addf %134, %139 : vector<24x128xf32>
    %c3_155 = arith.constant 3 : index
    %c0_156 = arith.constant 0 : index
    %141 = vector.load %arg6[%c3_155, %c0_156] : memref<28x128xf32, #tpu.memory_space<vmem>>, vector<24x128xf32>
    %142 = arith.truncf %141 : vector<24x128xf32> to vector<24x128xbf16>
    %c3_157 = arith.constant 3 : index
    %c3_158 = arith.constant 3 : index
    %c0_159 = arith.constant 0 : index
    %c0_160 = arith.constant 0 : index
    %143 = vector.load %arg2[%c3_157, %c3_158, %c0_159, %c0_160] : memref<5x5x128x128xbf16, #tpu.memory_space<vmem>>, vector<1x1x128x128xbf16>
    %144 = vector.shape_cast %143 : vector<1x1x128x128xbf16> to vector<128x128xbf16>
    %cst_161 = arith.constant dense<0.000000e+00> : vector<24x128xf32>
    %145 = tpu.matmul %142, %144, %cst_161 {dimension_numbers = #tpu.dot_dimension_numbers<[1], [0], [0], [1], [0, 0, 1, 1], [], []>} : vector<24x128xbf16>, vector<128x128xbf16>, vector<24x128xf32> -> vector<24x128xf32>
    %146 = arith.addf %140, %145 : vector<24x128xf32>
    %c4_162 = arith.constant 4 : index
    %c0_163 = arith.constant 0 : index
    %147 = vector.load %arg6[%c4_162, %c0_163] : memref<28x128xf32, #tpu.memory_space<vmem>>, vector<24x128xf32>
    %148 = arith.truncf %147 : vector<24x128xf32> to vector<24x128xbf16>
    %c3_164 = arith.constant 3 : index
    %c4_165 = arith.constant 4 : index
    %c0_166 = arith.constant 0 : index
    %c0_167 = arith.constant 0 : index
    %149 = vector.load %arg2[%c3_164, %c4_165, %c0_166, %c0_167] : memref<5x5x128x128xbf16, #tpu.memory_space<vmem>>, vector<1x1x128x128xbf16>
    %150 = vector.shape_cast %149 : vector<1x1x128x128xbf16> to vector<128x128xbf16>
    %cst_168 = arith.constant dense<0.000000e+00> : vector<24x128xf32>
    %151 = tpu.matmul %148, %150, %cst_168 {dimension_numbers = #tpu.dot_dimension_numbers<[1], [0], [0], [1], [0, 0, 1, 1], [], []>} : vector<24x128xbf16>, vector<128x128xbf16>, vector<24x128xf32> -> vector<24x128xf32>
    %152 = arith.addf %146, %151 : vector<24x128xf32>
    %153 = vector.broadcast %121 : vector<1x128xf32> to vector<24x128xf32>
    %154 = arith.addf %152, %153 : vector<24x128xf32>
    %155 = math.tanh %154 : vector<24x128xf32>
    %c2_169 = arith.constant 2 : index
    %c0_170 = arith.constant 0 : index
    %156 = vector.load %arg5[%c2_169, %c0_170] : memref<28x128xf32, #tpu.memory_space<vmem>>, vector<24x128xf32>
    tpu.vector_store %arg5[%c2_169, %c0_170], %155 {strides = array<i32>} : memref<28x128xf32, #tpu.memory_space<vmem>>, vector<24x128xf32>,
    %c4_171 = arith.constant 4 : index
    %c0_172 = arith.constant 0 : index
    %c0_173 = arith.constant 0 : index
    %157 = vector.load %arg3[%c4_171, %c0_172, %c0_173] : memref<5x1x128xf32, #tpu.memory_space<vmem>>, vector<1x1x128xf32>
    %158 = vector.shape_cast %157 : vector<1x1x128xf32> to vector<1x128xf32>
    %cst_174 = arith.constant 0.000000e+00 : f32
    %159 = vector.broadcast %cst_174 : f32 to vector<24x128xf32>
    %c0_175 = arith.constant 0 : index
    %c0_176 = arith.constant 0 : index
    %160 = vector.load %arg5[%c0_175, %c0_176] : memref<28x128xf32, #tpu.memory_space<vmem>>, vector<24x128xf32>
    %161 = arith.truncf %160 : vector<24x128xf32> to vector<24x128xbf16>
    %c4_177 = arith.constant 4 : index
    %c0_178 = arith.constant 0 : index
    %c0_179 = arith.constant 0 : index
    %c0_180 = arith.constant 0 : index
    %162 = vector.load %arg2[%c4_177, %c0_178, %c0_179, %c0_180] : memref<5x5x128x128xbf16, #tpu.memory_space<vmem>>, vector<1x1x128x128xbf16>
    %163 = vector.shape_cast %162 : vector<1x1x128x128xbf16> to vector<128x128xbf16>
    %cst_181 = arith.constant dense<0.000000e+00> : vector<24x128xf32>
    %164 = tpu.matmul %161, %163, %cst_181 {dimension_numbers = #tpu.dot_dimension_numbers<[1], [0], [0], [1], [0, 0, 1, 1], [], []>} : vector<24x128xbf16>, vector<128x128xbf16>, vector<24x128xf32> -> vector<24x128xf32>
    %165 = arith.addf %159, %164 : vector<24x128xf32>
    %c1_182 = arith.constant 1 : index
    %c0_183 = arith.constant 0 : index
    %166 = vector.load %arg5[%c1_182, %c0_183] : memref<28x128xf32, #tpu.memory_space<vmem>>, vector<24x128xf32>
    %167 = arith.truncf %166 : vector<24x128xf32> to vector<24x128xbf16>
    %c4_184 = arith.constant 4 : index
    %c1_185 = arith.constant 1 : index
    %c0_186 = arith.constant 0 : index
    %c0_187 = arith.constant 0 : index
    %168 = vector.load %arg2[%c4_184, %c1_185, %c0_186, %c0_187] : memref<5x5x128x128xbf16, #tpu.memory_space<vmem>>, vector<1x1x128x128xbf16>
    %169 = vector.shape_cast %168 : vector<1x1x128x128xbf16> to vector<128x128xbf16>
    %cst_188 = arith.constant dense<0.000000e+00> : vector<24x128xf32>
    %170 = tpu.matmul %167, %169, %cst_188 {dimension_numbers = #tpu.dot_dimension_numbers<[1], [0], [0], [1], [0, 0, 1, 1], [], []>} : vector<24x128xbf16>, vector<128x128xbf16>, vector<24x128xf32> -> vector<24x128xf32>
    %171 = arith.addf %165, %170 : vector<24x128xf32>
    %c2_189 = arith.constant 2 : index
    %c0_190 = arith.constant 0 : index
    %172 = vector.load %arg5[%c2_189, %c0_190] : memref<28x128xf32, #tpu.memory_space<vmem>>, vector<24x128xf32>
    %173 = arith.truncf %172 : vector<24x128xf32> to vector<24x128xbf16>
    %c4_191 = arith.constant 4 : index
    %c2_192 = arith.constant 2 : index
    %c0_193 = arith.constant 0 : index
    %c0_194 = arith.constant 0 : index
    %174 = vector.load %arg2[%c4_191, %c2_192, %c0_193, %c0_194] : memref<5x5x128x128xbf16, #tpu.memory_space<vmem>>, vector<1x1x128x128xbf16>
    %175 = vector.shape_cast %174 : vector<1x1x128x128xbf16> to vector<128x128xbf16>
    %cst_195 = arith.constant dense<0.000000e+00> : vector<24x128xf32>
    %176 = tpu.matmul %173, %175, %cst_195 {dimension_numbers = #tpu.dot_dimension_numbers<[1], [0], [0], [1], [0, 0, 1, 1], [], []>} : vector<24x128xbf16>, vector<128x128xbf16>, vector<24x128xf32> -> vector<24x128xf32>
    %177 = arith.addf %171, %176 : vector<24x128xf32>
    %c3_196 = arith.constant 3 : index
    %c0_197 = arith.constant 0 : index
    %178 = vector.load %arg5[%c3_196, %c0_197] : memref<28x128xf32, #tpu.memory_space<vmem>>, vector<24x128xf32>
    %179 = arith.truncf %178 : vector<24x128xf32> to vector<24x128xbf16>
    %c4_198 = arith.constant 4 : index
    %c3_199 = arith.constant 3 : index
    %c0_200 = arith.constant 0 : index
    %c0_201 = arith.constant 0 : index
    %180 = vector.load %arg2[%c4_198, %c3_199, %c0_200, %c0_201] : memref<5x5x128x128xbf16, #tpu.memory_space<vmem>>, vector<1x1x128x128xbf16>
    %181 = vector.shape_cast %180 : vector<1x1x128x128xbf16> to vector<128x128xbf16>
    %cst_202 = arith.constant dense<0.000000e+00> : vector<24x128xf32>
    %182 = tpu.matmul %179, %181, %cst_202 {dimension_numbers = #tpu.dot_dimension_numbers<[1], [0], [0], [1], [0, 0, 1, 1], [], []>} : vector<24x128xbf16>, vector<128x128xbf16>, vector<24x128xf32> -> vector<24x128xf32>
    %183 = arith.addf %177, %182 : vector<24x128xf32>
    %c4_203 = arith.constant 4 : index
    %c0_204 = arith.constant 0 : index
    %184 = vector.load %arg5[%c4_203, %c0_204] : memref<28x128xf32, #tpu.memory_space<vmem>>, vector<24x128xf32>
    %185 = arith.truncf %184 : vector<24x128xf32> to vector<24x128xbf16>
    %c4_205 = arith.constant 4 : index
    %c4_206 = arith.constant 4 : index
    %c0_207 = arith.constant 0 : index
    %c0_208 = arith.constant 0 : index
    %186 = vector.load %arg2[%c4_205, %c4_206, %c0_207, %c0_208] : memref<5x5x128x128xbf16, #tpu.memory_space<vmem>>, vector<1x1x128x128xbf16>
    %187 = vector.shape_cast %186 : vector<1x1x128x128xbf16> to vector<128x128xbf16>
    %cst_209 = arith.constant dense<0.000000e+00> : vector<24x128xf32>
    %188 = tpu.matmul %185, %187, %cst_209 {dimension_numbers = #tpu.dot_dimension_numbers<[1], [0], [0], [1], [0, 0, 1, 1], [], []>} : vector<24x128xbf16>, vector<128x128xbf16>, vector<24x128xf32> -> vector<24x128xf32>
    %189 = arith.addf %183, %188 : vector<24x128xf32>
    %190 = vector.broadcast %158 : vector<1x128xf32> to vector<24x128xf32>
    %191 = arith.addf %189, %190 : vector<24x128xf32>
    %192 = vector.extract_strided_slice %191 {offsets = [0, 0], sizes = [24, 16], strides = [1, 1]} : vector<24x128xf32> to vector<24x16xf32>
    %c0_210 = arith.constant 0 : index
    %c0_211 = arith.constant 0 : index
    %c0_212 = arith.constant 0 : index
    %193 = vector.load %arg4[%c0_210, %c0_211, %c0_212] : memref<1x24x16xf32, #tpu.memory_space<vmem>>, vector<1x24x16xf32>
    %194 = vector.shape_cast %193 : vector<1x24x16xf32> to vector<24x16xf32>
    %195 = vector.shape_cast %192 : vector<24x16xf32> to vector<1x24x16xf32>
    tpu.vector_store %arg4[%c0_210, %c0_211, %c0_212], %195 {strides = array<i32>} : memref<1x24x16xf32, #tpu.memory_space<vmem>>, vector<1x24x16xf32>,
    return
  }
  func.func @transform_0(%arg0: i32) -> (i32, i32, i32) {
    %c0_i32 = arith.constant 0 : i32
    %c0_i32_0 = arith.constant 0 : i32
    %c0_i32_1 = arith.constant 0 : i32
    return %arg0, %c0_i32, %c0_i32_0 : i32, i32, i32
  }
  func.func @transform_1(%arg0: i32) -> (i32, i32, i32, i32) {
    %c0_i32 = arith.constant 0 : i32
    %c0_i32_0 = arith.constant 0 : i32
    %c0_i32_1 = arith.constant 0 : i32
    %c0_i32_2 = arith.constant 0 : i32
    %c0_i32_3 = arith.constant 0 : i32
    return %c0_i32, %c0_i32_0, %c0_i32_1, %c0_i32_2 : i32, i32, i32, i32
  }
  func.func @transform_2(%arg0: i32) -> (i32, i32, i32) {
    %c0_i32 = arith.constant 0 : i32
    %c0_i32_0 = arith.constant 0 : i32
    %c0_i32_1 = arith.constant 0 : i32
    %c0_i32_2 = arith.constant 0 : i32
    return %c0_i32, %c0_i32_0, %c0_i32_1 : i32, i32, i32
  }
  func.func @transform_3(%arg0: i32) -> (i32, i32, i32) {
    %c0_i32 = arith.constant 0 : i32
    %c0_i32_0 = arith.constant 0 : i32
    %c0_i32_1 = arith.constant 0 : i32
    return %arg0, %c0_i32, %c0_i32_0 : i32, i32, i32
  }
}

</mosaic_0001>

<llo_original>
// kernel: postnet_forward.1
$region0: #{postnet_forward.1}
  #allocation0 [shape = 'u32[]', space=smem, size = 0x4, offset = 0x4, fixed_abs, tag = 'smem constant byte address 0x4 - core index']
  #allocation1 [shape = 'u32[72,128]{1,0:T(1,128)}', space=vmem, size = 0x9000, scoped, tag = 'internal scratch']
  #allocation2 [shape = 'f32[28,128]{1,0:T(8,128)}', space=vmem, size = 0x4000, scoped, tag = 'scratch operand']
  #allocation3 [shape = 'f32[28,128]{1,0:T(8,128)}', space=vmem, size = 0x4000, scoped, tag = 'scratch operand']
  %s0 = inlined_call_operand.vmem [shape: f32[2,24,16], index: 0, kind: input, shape index: {}]
  %s1 = inlined_call_operand.hbm [shape: bf16[5,5,128,128], index: 1, kind: input, shape index: {}]
  %s2 = inlined_call_operand.vmem [shape: f32[5,1,128], index: 2, kind: input, shape index: {}]
  %s3 = inlined_call_operand.vmem [shape: f32[2,24,16], index: 3, kind: output, shape index: {}]
  %s4 = sld [smem:[#allocation0]]
  $region49: #{postnet_forward.1} parent=0
    _
  %s6 = ssub.s32 1, %s4
  %s7 = scalar_select 0, %s6, %s4
  $region1: #{postnet_forward.1} parent=0
    #allocation4 [shape = 'u8[819200]{0}', space=vmem, size = 0xc8000, scoped, tag = 'input window, operand 1, single buffered']
    #allocation5 [shape = 's32[2]{0}', space=sflag, size = 0x8, scoped, tag = 'scoped memory for postnet_forward.1']
    %8 = vsyncpa [#allocation5], 0
    loop: start=0, step=1, limit=4
    $region2: #{postnet_forward.1} parent=1 // loop_pre_header
      _
    $region3: #{postnet_forward.1} parent=1 // loop_header
      %s10 = sphi 0, %s14
      %p11 = scmp.ge.s32.totalorder %s10, 4
      %s20 = sphi 0, %s22
      %s23 = sphi 0, %s20
      %s24 = sphi 0, %s23
      %s40 = sphi 0, %s24
      %s44 = sphi 0, %s44
      %s46 = sphi 0, %s44
      %s47 = sphi 0, %s46
      %s61 = sphi 0, %s47
      %s65 = sphi 0, %s65
      %s67 = sphi 0, %s65
      %s68 = sphi 0, %s67
      %s82 = sphi 0, %s68
      %s88 = sphi 0, %s90
      %s91 = sphi 0, %s88
      %s92 = sphi 0, %s91
      %s108 = sphi 0, %s92
    $region4: #{postnet_forward.1} parent=1 // loop_header_branch
      %13 = sbr.rel (%p11) target = $region8
    $region5: #{postnet_forward.1} parent=1 // loop_body
      %s15 = ssub.s32 %s10, 1
      %s16 = ssub.s32 %s10, 2
      %s17 = sadd.s32 %s10, 1
      %s18 = ssub.s32 %s10, %s17
      %p19 = scmp.eq.s32.totalorder %s18, 0
      %s21 = sadd.s32 %s20, 1
      %s22 = scalar_select %p19, %s20, %s21
      %p25 = pneg %p19
      %p26 = scmp.eq.s32.totalorder %s10, 1
      %p27 = por %p25, %p26
      %p28 = scmp.ne.s32.totalorder %s20, %s23
      %p29 = scmp.eq.s32.totalorder %s10, 0
      %p30 = por %p28, %p29
      %p31 = scmp.ne.s32.totalorder %s20, %s23
      %p32 = scmp.eq.s32.totalorder %s15, 1
      %p33 = por %p31, %p32
      %p34 = scmp.ne.s32.totalorder %s23, %s24
      %p35 = scmp.eq.s32.totalorder %s15, 0
      %p36 = por %p34, %p35
      %p37 = scmp.ne.s32.totalorder %s23, %s24
      %p38 = scmp.eq.s32.totalorder %s16, 1
      %p39 = por %p37, %p38
      %p41 = scmp.ne.s32.totalorder %s24, %s40
      %p42 = scmp.eq.s32.totalorder %s16, 0
      %p43 = por %p41, %p42
      %s45 = sadd.s32 %s44, 1
      %p48 = scmp.eq.s32.totalorder %s10, 1
      %p49 = scmp.ne.s32.totalorder %s44, %s46
      %p50 = scmp.eq.s32.totalorder %s10, 0
      %p51 = por %p49, %p50
      %p52 = scmp.ne.s32.totalorder %s44, %s46
      %p53 = scmp.eq.s32.totalorder %s15, 1
      %p54 = por %p52, %p53
      %p55 = scmp.ne.s32.totalorder %s46, %s47
      %p56 = scmp.eq.s32.totalorder %s15, 0
      %p57 = por %p55, %p56
      %p58 = scmp.ne.s32.totalorder %s46, %s47
      %p59 = scmp.eq.s32.totalorder %s16, 1
      %p60 = por %p58, %p59
      %p62 = scmp.ne.s32.totalorder %s47, %s61
      %p63 = scmp.eq.s32.totalorder %s16, 0
      %p64 = por %p62, %p63
      %s66 = sadd.s32 %s65, 1
      %p69 = scmp.eq.s32.totalorder %s10, 1
      %p70 = scmp.ne.s32.totalorder %s65, %s67
      %p71 = scmp.eq.s32.totalorder %s10, 0
      %p72 = por %p70, %p71
      %p73 = scmp.ne.s32.totalorder %s65, %s67
      %p74 = scmp.eq.s32.totalorder %s15, 1
      %p75 = por %p73, %p74
      %p76 = scmp.ne.s32.totalorder %s67, %s68
      %p77 = scmp.eq.s32.totalorder %s15, 0
      %p78 = por %p76, %p77
      %p79 = scmp.ne.s32.totalorder %s67, %s68
      %p80 = scmp.eq.s32.totalorder %s16, 1
      %p81 = por %p79, %p80
      %p83 = scmp.ne.s32.totalorder %s68, %s82
      %p84 = scmp.eq.s32.totalorder %s16, 0
      %p85 = por %p83, %p84
      %s86 = ssub.s32 %s10, %s17
      %p87 = scmp.eq.s32.totalorder %s86, 0
      %s89 = sadd.s32 %s88, 1
      %s90 = scalar_select %p87, %s88, %s89
      %p93 = pneg %p87
      %p94 = scmp.eq.s32.totalorder %s10, 1
      %p95 = por %p93, %p94
      %p96 = scmp.ne.s32.totalorder %s88, %s91
      %p97 = scmp.eq.s32.totalorder %s10, 0
      %p98 = por %p96, %p97
      %p99 = scmp.ne.s32.totalorder %s88, %s91
      %p100 = scmp.eq.s32.totalorder %s15, 1
      %p101 = por %p99, %p100
      %p102 = scmp.ne.s32.totalorder %s91, %s92
      %p103 = scmp.eq.s32.totalorder %s15, 0
      %p104 = por %p102, %p103
      %p105 = scmp.ne.s32.totalorder %s91, %s92
      %p106 = scmp.eq.s32.totalorder %s16, 1
      %p107 = por %p105, %p106
      %p109 = scmp.ne.s32.totalorder %s92, %s108
      %p110 = scmp.eq.s32.totalorder %s16, 0
      %p111 = por %p109, %p110
      %p112 = scmp.le.s32.totalorder 1, %s10
      %p113 = scmp.lt.s32.totalorder %s10, 3
      %p114 = pnand %p112, %p113
      %p115 = pneg %p114
      // Predicated region
      $region9: #{postnet_forward.1} parent=5 // pred_check
        _
      $region10: #{postnet_forward.1} parent=5 // pred_check_branch
        %117 = sbr.rel (%p114) target = $region12
      $region11: #{postnet_forward.1} parent=5 // pred_region
        %s118 = ssub.s32 %s10, 1
        // Predicated region
        $region13: #{postnet_forward.1} parent=11 // pred_check
          %p119 = pneg %p57
        $region14: #{postnet_forward.1} parent=11 // pred_check_branch
          %121 = sbr.rel (%p119) target = $region16
        $region15: #{postnet_forward.1} parent=11 // pred_region
          %123 = vsyncadd [#allocation5], 0
          %s124 = sshll.u32 %s1, 4
          %s125 = int_to_ptr.hbm [resolvable:$true] %s124
          %s126 = sshll.u32 [#allocation4], 4
          %s127 = int_to_ptr.vmem [resolvable:$true] %s126
          %132 = dma.hbm_to_vmem [thread:$0]  %s125, 25600, %s127, [#allocation5], 64, 64, 4
        $region16: #{postnet_forward.1} parent=11 // pred_fallthru
          _
        // Predicated region
        $region17: #{postnet_forward.1} parent=11 // pred_check
          %p133 = pneg %p78
        $region18: #{postnet_forward.1} parent=11 // pred_check_branch
          %135 = sbr.rel (%p133) target = $region20
        $region19: #{postnet_forward.1} parent=11 // pred_region
          _
        $region20: #{postnet_forward.1} parent=11 // pred_fallthru
          _
      $region12: #{postnet_forward.1} parent=5 // pred_fallthru
        _
      %p136 = scmp.lt.s32.totalorder %s10, 2
      // Predicated region
      $region21: #{postnet_forward.1} parent=5 // pred_check
        %p137 = pneg %p136
      $region22: #{postnet_forward.1} parent=5 // pred_check_branch
        %139 = sbr.rel (%p137) target = $region24
      $region23: #{postnet_forward.1} parent=5 // pred_region
        // Predicated region
        $region25: #{postnet_forward.1} parent=23 // pred_check
          %p140 = pneg %p30
        $region26: #{postnet_forward.1} parent=23 // pred_check_branch
          %142 = sbr.rel (%p140) target = $region28
        $region27: #{postnet_forward.1} parent=23 // pred_region
          %p143 = scmp.lt.s32.totalorder %s10, 1
          %s144 = scalar_select %p143, %s10, 1
          %s145 = smul.addr %s144, 3
          %s146 = smul.addr %s145, 8
          %s147 = scalar_lea.vmem %s0, %s146
        $region28: #{postnet_forward.1} parent=23 // pred_fallthru
          _
      $region24: #{postnet_forward.1} parent=5 // pred_fallthru
        _
      %p148 = scmp.le.s32.totalorder 1, %s10
      %p149 = scmp.lt.s32.totalorder %s10, 3
      %p150 = pnand %p148, %p149
      %p151 = pneg %p150
      // Predicated region
      $region29: #{postnet_forward.1} parent=5 // pred_check
        _
      $region30: #{postnet_forward.1} parent=5 // pred_check_branch
        %153 = sbr.rel (%p150) target = $region32
      $region31: #{postnet_forward.1} parent=5 // pred_region
        %s154 = ssub.s32 %s10, 1
        // Predicated region
        $region33: #{postnet_forward.1} parent=31 // pred_check
          %p155 = pneg %p57
        $region34: #{postnet_forward.1} parent=31 // pred_check_branch
          %157 = sbr.rel (%p155) target = $region36
        $region35: #{postnet_forward.1} parent=31 // pred_region
          %159 = dma.done [#allocation5], 25600
        $region36: #{postnet_forward.1} parent=31 // pred_fallthru
          _
        %p160 = scmp.lt.s32.totalorder %s15, 1
        %s161 = scalar_select %p160, %s15, 1
        %s162 = smul.addr %s161, 3
        %s163 = smul.addr %s162, 8
        %s164 = scalar_lea.vmem %s0, %s163
        %p165 = pneg %p36
        %p166 = pneg %p33
        %p167 = pneg %p57
        %p168 = pneg %p54
        %p169 = pneg %p78
        %p170 = pneg %p75
        %p171 = pneg %p104
        %p172 = pneg %p101
        %p173 = scmp.lt.s32.totalorder %s15, 1
        %s174 = scalar_select %p173, %s15, 1
        %s175 = smul.addr %s174, 3
        %s176 = smul.addr %s175, 8
        %s177 = scalar_lea.vmem %s3, %s176
        %p178 = scmp.lt.s32.totalorder %s15, 1
        %s179 = scalar_select %p178, %s15, 1
        %s180 = smul.addr %s179, 3
        %s181 = smul.addr %s180, 8
        %s182 = scalar_lea.vmem %s0, %s181
        %p183 = scmp.lt.s32.totalorder %s15, 1
        %s184 = scalar_select %p183, %s15, 1
        %s185 = smul.addr %s184, 3
        %s186 = smul.addr %s185, 8
        %s187 = scalar_lea.vmem %s3, %s186
        %188 = vst [vmem:[#allocation2] sm:$0xff] 0.0
        %189 = vst [vmem:[#allocation2 + $0x8] sm:$0xff] 0.0
        %190 = vst [vmem:[#allocation2 + $0x10] sm:$0xff] 0.0
        %191 = vst [vmem:[#allocation2 + $0x18] sm:$0xf] 0.0
        %192 = vst [vmem:[#allocation3] sm:$0x3] 0.0
        %193 = vst [vmem:[#allocation3 + $0x1a] sm:$0x3] 0.0
        %v194 = vld [vmem:[%s182] sm:$0xff]
        %v195 = vld [vmem:[%s182 + $0x8] sm:$0xff]
        %v196 = vld [vmem:[%s182 + $0x10] sm:$0xff]
        %vm197 = vcmask 130048
        %198 = vst.msk [vmem:[#allocation2 + $0x2] sm:$0xff] %vm197, %v194
        %199 = vst.msk [vmem:[#allocation2 + $0xa] sm:$0xff] %vm197, %v195
        %200 = vst.msk [vmem:[#allocation2 + $0x12] sm:$0xff] %vm197, %v196
        %v201 = vld [vmem:[%s2] sm:$0x1]
        %v202 = vld [vmem:[#allocation2] sm:$0xff]
        %v203 = vld [vmem:[#allocation2 + $0x8] sm:$0xff]
        %v204 = vld [vmem:[#allocation2 + $0x10] sm:$0xff]
        %v205 = vpack.c.bf16 %v203, %v202
        %v206 = vpack.c.bf16 %v204, %v204
        %v207 = vld [vmem:[#allocation4] sm:$0xf]
        %v208 = vld [vmem:[#allocation4 + $0x4] sm:$0xf]
        %v209 = vld [vmem:[#allocation4 + $0x8] sm:$0xf]
        %v210 = vld [vmem:[#allocation4 + $0xc] sm:$0xf]
        %v211 = vld [vmem:[#allocation4 + $0x10] sm:$0xf]
        %v212 = vld [vmem:[#allocation4 + $0x14] sm:$0xf]
        %v213 = vld [vmem:[#allocation4 + $0x18] sm:$0xf]
        %v214 = vld [vmem:[#allocation4 + $0x1c] sm:$0xf]
        %v215 = vld [vmem:[#allocation4 + $0x20] sm:$0xf]
        %v216 = vld [vmem:[#allocation4 + $0x24] sm:$0xf]
        %v217 = vld [vmem:[#allocation4 + $0x28] sm:$0xf]
        %v218 = vld [vmem:[#allocation4 + $0x2c] sm:$0xf]
        %v219 = vld [vmem:[#allocation4 + $0x30] sm:$0xf]
        %v220 = vld [vmem:[#allocation4 + $0x34] sm:$0xf]
        %v221 = vld [vmem:[#allocation4 + $0x38] sm:$0xf]
        %v222 = vld [vmem:[#allocation4 + $0x3c] sm:$0xf]
        %v223 = vld [vmem:[#allocation2 + $0x1] sm:$0xff]
        %v224 = vld [vmem:[#allocation2 + $0x9] sm:$0xff]
        %v225 = vld [vmem:[#allocation2 + $0x11] sm:$0xff]
        %v226 = vpack.c.bf16 %v224, %v223
        %v227 = vpack.c.bf16 %v225, %v225
        %s228 = scalar_lea.vmem [#allocation4], 64
        %v229 = vld [vmem:[%s228] sm:$0xf]
        %v230 = vld [vmem:[%s228 + $0x4] sm:$0xf]
        %v231 = vld [vmem:[%s228 + $0x8] sm:$0xf]
        %v232 = vld [vmem:[%s228 + $0xc] sm:$0xf]
        %v233 = vld [vmem:[%s228 + $0x10] sm:$0xf]
        %v234 = vld [vmem:[%s228 + $0x14] sm:$0xf]
        %v235 = vld [vmem:[%s228 + $0x18] sm:$0xf]
        %v236 = vld [vmem:[%s228 + $0x1c] sm:$0xf]
        %v237 = vld [vmem:[%s228 + $0x20] sm:$0xf]
        %v238 = vld [vmem:[%s228 + $0x24] sm:$0xf]
        %v239 = vld [vmem:[%s228 + $0x28] sm:$0xf]
        %v240 = vld [vmem:[%s228 + $0x2c] sm:$0xf]
        %v241 = vld [vmem:[%s228 + $0x30] sm:$0xf]
        %v242 = vld [vmem:[%s228 + $0x34] sm:$0xf]
        %v243 = vld [vmem:[%s228 + $0x38] sm:$0xf]
        %v244 = vld [vmem:[%s228 + $0x3c] sm:$0xf]
        %v261 = vunpack.c.l.b16 %v229
        %v262 = vunpack.c.l.b16 %v230
        %v263 = vunpack.c.l.b16 %v231
        %v264 = vunpack.c.l.b16 %v232
        %v265 = vunpack.c.l.b16 %v233
        %v266 = vunpack.c.l.b16 %v234
        %v267 = vunpack.c.l.b16 %v235
        %v268 = vunpack.c.l.b16 %v236
        %v269 = vunpack.c.l.b16 %v237
        %v270 = vunpack.c.l.b16 %v238
        %v271 = vunpack.c.l.b16 %v239
        %v272 = vunpack.c.l.b16 %v240
        %v273 = vunpack.c.l.b16 %v241
        %v274 = vunpack.c.l.b16 %v242
        %v275 = vunpack.c.l.b16 %v243
        %v276 = vunpack.c.l.b16 %v244
        %v277 = vpack.c.b16 %v262, %v261
        %v278 = vpack.c.b16 %v264, %v263
        %v279 = vpack.c.b16 %v266, %v265
        %v280 = vpack.c.b16 %v268, %v267
        %v281 = vpack.c.b16 %v270, %v269
        %v282 = vpack.c.b16 %v272, %v271
        %v283 = vpack.c.b16 %v274, %v273
        %v284 = vpack.c.b16 %v276, %v275
        %293 = vmatpush.bf16.msra.mxu0 %v284
        %294 = vmatpush.bf16.msra.mxu0 %v283
        %295 = vmatpush.bf16.msra.mxu0 %v282
        %296 = vmatpush.bf16.msra.mxu0 %v281
        %297 = vmatpush.bf16.msra.mxu0 %v280
        %298 = vmatpush.bf16.msra.mxu0 %v279
        %299 = vmatpush.bf16.msra.mxu0 %v278
        %300 = vmatpush.bf16.msra.mxu0 %v277
        %301 = vmatmul.bf16.gmra.mxu0 %v226
        %v302 = vpop.f32.mrf.mxu0
        %v303 = vadd.f32 0.0, %v302
        %v304 = vpop.f32.mrf.mxu0
        %v305 = vadd.f32 0.0, %v304
        %306 = vmatmul.bf16.gmra.mxu0 %v227
        %v307 = vpop.f32.mrf.mxu0
        %v308 = vadd.f32 0.0, %v307
        %v309 = vpop.f32.mrf.mxu0
        %310 = vdwg.mxu0
        %v327 = vunpack.c.l.b16 %v207
        %v328 = vunpack.c.l.b16 %v208
        %v329 = vunpack.c.l.b16 %v209
        %v330 = vunpack.c.l.b16 %v210
        %v331 = vunpack.c.l.b16 %v211
        %v332 = vunpack.c.l.b16 %v212
        %v333 = vunpack.c.l.b16 %v213
        %v334 = vunpack.c.l.b16 %v214
        %v335 = vunpack.c.l.b16 %v215
        %v336 = vunpack.c.l.b16 %v216
        %v337 = vunpack.c.l.b16 %v217
        %v338 = vunpack.c.l.b16 %v218
        %v339 = vunpack.c.l.b16 %v219
        %v340 = vunpack.c.l.b16 %v220
        %v341 = vunpack.c.l.b16 %v221
        %v342 = vunpack.c.l.b16 %v222
        %v343 = vpack.c.b16 %v328, %v327
        %v344 = vpack.c.b16 %v330, %v329
        %v345 = vpack.c.b16 %v332, %v331
        %v346 = vpack.c.b16 %v334, %v333
        %v347 = vpack.c.b16 %v336, %v335
        %v348 = vpack.c.b16 %v338, %v337
        %v349 = vpack.c.b16 %v340, %v339
        %v350 = vpack.c.b16 %v342, %v341
        %359 = vmatpush.bf16.msra.mxu0 %v350
        %360 = vmatpush.bf16.msra.mxu0 %v349
        %361 = vmatpush.bf16.msra.mxu0 %v348
        %362 = vmatpush.bf16.msra.mxu0 %v347
        %363 = vmatpush.bf16.msra.mxu0 %v346
        %364 = vmatpush.bf16.msra.mxu0 %v345
        %365 = vmatpush.bf16.msra.mxu0 %v344
        %366 = vmatpush.bf16.msra.mxu0 %v343
        %367 = vmatmul.bf16.gmra.mxu0 %v205
        %v368 = vpop.f32.mrf.mxu0
        %v369 = vadd.f32 %v303, %v368
        %v370 = vpop.f32.mrf.mxu0
        %v371 = vadd.f32 %v305, %v370
        %372 = vmatmul.bf16.gmra.mxu0 %v206
        %v373 = vpop.f32.mrf.mxu0
        %v374 = vadd.f32 %v308, %v373
        %v375 = vpop.f32.mrf.mxu0
        %376 = vdwg.mxu0
        %v377 = vld [vmem:[#allocation2 + $0x2] sm:$0xff]
        %v378 = vld [vmem:[#allocation2 + $0xa] sm:$0xff]
        %v379 = vld [vmem:[#allocation2 + $0x12] sm:$0xff]
        %v380 = vpack.c.bf16 %v378, %v377
        %v381 = vpack.c.bf16 %v379, %v379
        %s382 = scalar_lea.vmem [#allocation4], 128
        %v383 = vld [vmem:[%s382] sm:$0xf]
        %v384 = vld [vmem:[%s382 + $0x4] sm:$0xf]
        %v385 = vld [vmem:[%s382 + $0x8] sm:$0xf]
        %v386 = vld [vmem:[%s382 + $0xc] sm:$0xf]
        %v387 = vld [vmem:[%s382 + $0x10] sm:$0xf]
        %v388 = vld [vmem:[%s382 + $0x14] sm:$0xf]
        %v389 = vld [vmem:[%s382 + $0x18] sm:$0xf]
        %v390 = vld [vmem:[%s382 + $0x1c] sm:$0xf]
        %v391 = vld [vmem:[%s382 + $0x20] sm:$0xf]
        %v392 = vld [vmem:[%s382 + $0x24] sm:$0xf]
        %v393 = vld [vmem:[%s382 + $0x28] sm:$0xf]
        %v394 = vld [vmem:[%s382 + $0x2c] sm:$0xf]
        %v395 = vld [vmem:[%s382 + $0x30] sm:$0xf]
        %v396 = vld [vmem:[%s382 + $0x34] sm:$0xf]
        %v397 = vld [vmem:[%s382 + $0x38] sm:$0xf]
        %v398 = vld [vmem:[%s382 + $0x3c] sm:$0xf]
        %v415 = vunpack.c.l.b16 %v383
        %v416 = vunpack.c.l.b16 %v384
        %v417 = vunpack.c.l.b16 %v385
        %v418 = vunpack.c.l.b16 %v386
        %v419 = vunpack.c.l.b16 %v387
        %v420 = vunpack.c.l.b16 %v388
        %v421 = vunpack.c.l.b16 %v389
        %v422 = vunpack.c.l.b16 %v390
        %v423 = vunpack.c.l.b16 %v391
        %v424 = vunpack.c.l.b16 %v392
        %v425 = vunpack.c.l.b16 %v393
        %v426 = vunpack.c.l.b16 %v394
        %v427 = vunpack.c.l.b16 %v395
        %v428 = vunpack.c.l.b16 %v396
        %v429 = vunpack.c.l.b16 %v397
        %v430 = vunpack.c.l.b16 %v398
        %v431 = vpack.c.b16 %v416, %v415
        %v432 = vpack.c.b16 %v418, %v417
        %v433 = vpack.c.b16 %v420, %v419
        %v434 = vpack.c.b16 %v422, %v421
        %v435 = vpack.c.b16 %v424, %v423
        %v436 = vpack.c.b16 %v426, %v425
        %v437 = vpack.c.b16 %v428, %v427
        %v438 = vpack.c.b16 %v430, %v429
        %447 = vmatpush.bf16.msra.mxu0 %v438
        %448 = vmatpush.bf16.msra.mxu0 %v437
        %449 = vmatpush.bf16.msra.mxu0 %v436
        %450 = vmatpush.bf16.msra.mxu0 %v435
        %451 = vmatpush.bf16.msra.mxu0 %v434
        %452 = vmatpush.bf16.msra.mxu0 %v433
        %453 = vmatpush.bf16.msra.mxu0 %v432
        %454 = vmatpush.bf16.msra.mxu0 %v431
        %455 = vmatmul.bf16.gmra.mxu0 %v380
        %v456 = vpop.f32.mrf.mxu0
        %v457 = vadd.f32 0.0, %v456
        %v458 = vpop.f32.mrf.mxu0
        %v459 = vadd.f32 0.0, %v458
        %460 = vmatmul.bf16.gmra.mxu0 %v381
        %v461 = vpop.f32.mrf.mxu0
        %v462 = vadd.f32 0.0, %v461
        %v463 = vpop.f32.mrf.mxu0
        %464 = vdwg.mxu0
        %v465 = vadd.f32 %v369, %v457
        %v466 = vadd.f32 %v371, %v459
        %v467 = vadd.f32 %v374, %v462
        %v468 = vld [vmem:[#allocation2 + $0x3] sm:$0xff]
        %v469 = vld [vmem:[#allocation2 + $0xb] sm:$0xff]
        %v470 = vld [vmem:[#allocation2 + $0x13] sm:$0xff]
        %v471 = vpack.c.bf16 %v469, %v468
        %v472 = vpack.c.bf16 %v470, %v470
        %s473 = scalar_lea.vmem [#allocation4], 192
        %v474 = vld [vmem:[%s473] sm:$0xf]
        %v475 = vld [vmem:[%s473 + $0x4] sm:$0xf]
        %v476 = vld [vmem:[%s473 + $0x8] sm:$0xf]
        %v477 = vld [vmem:[%s473 + $0xc] sm:$0xf]
        %v478 = vld [vmem:[%s473 + $0x10] sm:$0xf]
        %v479 = vld [vmem:[%s473 + $0x14] sm:$0xf]
        %v480 = vld [vmem:[%s473 + $0x18] sm:$0xf]
        %v481 = vld [vmem:[%s473 + $0x1c] sm:$0xf]
        %v482 = vld [vmem:[%s473 + $0x20] sm:$0xf]
        %v483 = vld [vmem:[%s473 + $0x24] sm:$0xf]
        %v484 = vld [vmem:[%s473 + $0x28] sm:$0xf]
        %v485 = vld [vmem:[%s473 + $0x2c] sm:$0xf]
        %v486 = vld [vmem:[%s473 + $0x30] sm:$0xf]
        %v487 = vld [vmem:[%s473 + $0x34] sm:$0xf]
        %v488 = vld [vmem:[%s473 + $0x38] sm:$0xf]
        %v489 = vld [vmem:[%s473 + $0x3c] sm:$0xf]
        %v506 = vunpack.c.l.b16 %v474
        %v507 = vunpack.c.l.b16 %v475
        %v508 = vunpack.c.l.b16 %v476
        %v509 = vunpack.c.l.b16 %v477
        %v510 = vunpack.c.l.b16 %v478
        %v511 = vunpack.c.l.b16 %v479
        %v512 = vunpack.c.l.b16 %v480
        %v513 = vunpack.c.l.b16 %v481
        %v514 = vunpack.c.l.b16 %v482
        %v515 = vunpack.c.l.b16 %v483
        %v516 = vunpack.c.l.b16 %v484
        %v517 = vunpack.c.l.b16 %v485
        %v518 = vunpack.c.l.b16 %v486
        %v519 = vunpack.c.l.b16 %v487
        %v520 = vunpack.c.l.b16 %v488
        %v521 = vunpack.c.l.b16 %v489
        %v522 = vpack.c.b16 %v507, %v506
        %v523 = vpack.c.b16 %v509, %v508
        %v524 = vpack.c.b16 %v511, %v510
        %v525 = vpack.c.b16 %v513, %v512
        %v526 = vpack.c.b16 %v515, %v514
        %v527 = vpack.c.b16 %v517, %v516
        %v528 = vpack.c.b16 %v519, %v518
        %v529 = vpack.c.b16 %v521, %v520
        %538 = vmatpush.bf16.msra.mxu0 %v529
        %539 = vmatpush.bf16.msra.mxu0 %v528
        %540 = vmatpush.bf16.msra.mxu0 %v527
        %541 = vmatpush.bf16.msra.mxu0 %v526
        %542 = vmatpush.bf16.msra.mxu0 %v525
        %543 = vmatpush.bf16.msra.mxu0 %v524
        %544 = vmatpush.bf16.msra.mxu0 %v523
        %545 = vmatpush.bf16.msra.mxu0 %v522
        %546 = vmatmul.bf16.gmra.mxu0 %v471
        %v547 = vpop.f32.mrf.mxu0
        %v548 = vadd.f32 0.0, %v547
        %v549 = vpop.f32.mrf.mxu0
        %v550 = vadd.f32 0.0, %v549
        %551 = vmatmul.bf16.gmra.mxu0 %v472
        %v552 = vpop.f32.mrf.mxu0
        %v553 = vadd.f32 0.0, %v552
        %v554 = vpop.f32.mrf.mxu0
        %555 = vdwg.mxu0
        %v556 = vadd.f32 %v465, %v548
        %v557 = vadd.f32 %v466, %v550
        %v558 = vadd.f32 %v467, %v553
        %v559 = vld [vmem:[#allocation2 + $0x4] sm:$0xff]
        %v560 = vld [vmem:[#allocation2 + $0xc] sm:$0xff]
        %v561 = vld [vmem:[#allocation2 + $0x14] sm:$0xff]
        %v562 = vpack.c.bf16 %v560, %v559
        %v563 = vpack.c.bf16 %v561, %v561
        %s564 = scalar_lea.vmem [#allocation4], 256
        %v565 = vld [vmem:[%s564] sm:$0xf]
        %v566 = vld [vmem:[%s564 + $0x4] sm:$0xf]
        %v567 = vld [vmem:[%s564 + $0x8] sm:$0xf]
        %v568 = vld [vmem:[%s564 + $0xc] sm:$0xf]
        %v569 = vld [vmem:[%s564 + $0x10] sm:$0xf]
        %v570 = vld [vmem:[%s564 + $0x14] sm:$0xf]
        %v571 = vld [vmem:[%s564 + $0x18] sm:$0xf]
        %v572 = vld [vmem:[%s564 + $0x1c] sm:$0xf]
        %v573 = vld [vmem:[%s564 + $0x20] sm:$0xf]
        %v574 = vld [vmem:[%s564 + $0x24] sm:$0xf]
        %v575 = vld [vmem:[%s564 + $0x28] sm:$0xf]
        %v576 = vld [vmem:[%s564 + $0x2c] sm:$0xf]
        %v577 = vld [vmem:[%s564 + $0x30] sm:$0xf]
        %v578 = vld [vmem:[%s564 + $0x34] sm:$0xf]
        %v579 = vld [vmem:[%s564 + $0x38] sm:$0xf]
        %v580 = vld [vmem:[%s564 + $0x3c] sm:$0xf]
        %v597 = vunpack.c.l.b16 %v565
        %v598 = vunpack.c.l.b16 %v566
        %v599 = vunpack.c.l.b16 %v567
        %v600 = vunpack.c.l.b16 %v568
        %v601 = vunpack.c.l.b16 %v569
        %v602 = vunpack.c.l.b16 %v570
        %v603 = vunpack.c.l.b16 %v571
        %v604 = vunpack.c.l.b16 %v572
        %v605 = vunpack.c.l.b16 %v573
        %v606 = vunpack.c.l.b16 %v574
        %v607 = vunpack.c.l.b16 %v575
        %v608 = vunpack.c.l.b16 %v576
        %v609 = vunpack.c.l.b16 %v577
        %v610 = vunpack.c.l.b16 %v578
        %v611 = vunpack.c.l.b16 %v579
        %v612 = vunpack.c.l.b16 %v580
        %v613 = vpack.c.b16 %v598, %v597
        %v614 = vpack.c.b16 %v600, %v599
        %v615 = vpack.c.b16 %v602, %v601
        %v616 = vpack.c.b16 %v604, %v603
        %v617 = vpack.c.b16 %v606, %v605
        %v618 = vpack.c.b16 %v608, %v607
        %v619 = vpack.c.b16 %v610, %v609
        %v620 = vpack.c.b16 %v612, %v611
        %629 = vmatpush.bf16.msra.mxu0 %v620
        %630 = vmatpush.bf16.msra.mxu0 %v619
        %631 = vmatpush.bf16.msra.mxu0 %v618
        %632 = vmatpush.bf16.msra.mxu0 %v617
        %633 = vmatpush.bf16.msra.mxu0 %v616
        %634 = vmatpush.bf16.msra.mxu0 %v615
        %635 = vmatpush.bf16.msra.mxu0 %v614
        %636 = vmatpush.bf16.msra.mxu0 %v613
        %637 = vmatmul.bf16.gmra.mxu0 %v562
        %v638 = vpop.f32.mrf.mxu0
        %v639 = vadd.f32 0.0, %v638
        %v640 = vpop.f32.mrf.mxu0
        %v641 = vadd.f32 0.0, %v640
        %642 = vmatmul.bf16.gmra.mxu0 %v563
        %v643 = vpop.f32.mrf.mxu0
        %v644 = vadd.f32 0.0, %v643
        %v645 = vpop.f32.mrf.mxu0
        %646 = vdwg.mxu0
        %v647 = vadd.f32 %v556, %v639
        %v648 = vadd.f32 %v557, %v641
        %v649 = vadd.f32 %v558, %v644
        %v651 = vperm.slane %v201, 0
        %v653 = vadd.f32 %v647, %v651
        %v654 = vadd.f32 %v648, %v651
        %v655 = vadd.f32 %v649, %v651
        %v656 = vtanh.pop %v653
        %v657 = vtanh.pop %v654
        %v658 = vtanh.pop %v655
        %659 = vst [vmem:[#allocation3 + $0x2] sm:$0xff] %v656
        %660 = vst [vmem:[#allocation3 + $0xa] sm:$0xff] %v657
        %661 = vst [vmem:[#allocation3 + $0x12] sm:$0xff] %v658
        %s662 = scalar_lea.vmem %s2, 1
        %v663 = vld [vmem:[%s662] sm:$0x1]
        %v664 = vld [vmem:[#allocation3] sm:$0xff]
        %v665 = vld [vmem:[#allocation3 + $0x8] sm:$0xff]
        %v666 = vld [vmem:[#allocation3 + $0x10] sm:$0xff]
        %v667 = vpack.c.bf16 %v665, %v664
        %v668 = vpack.c.bf16 %v666, %v666
        %s669 = scalar_lea.vmem [#allocation4], 320
        %v670 = vld [vmem:[%s669] sm:$0xf]
        %v671 = vld [vmem:[%s669 + $0x4] sm:$0xf]
        %v672 = vld [vmem:[%s669 + $0x8] sm:$0xf]
        %v673 = vld [vmem:[%s669 + $0xc] sm:$0xf]
        %v674 = vld [vmem:[%s669 + $0x10] sm:$0xf]
        %v675 = vld [vmem:[%s669 + $0x14] sm:$0xf]
        %v676 = vld [vmem:[%s669 + $0x18] sm:$0xf]
        %v677 = vld [vmem:[%s669 + $0x1c] sm:$0xf]
        %v678 = vld [vmem:[%s669 + $0x20] sm:$0xf]
        %v679 = vld [vmem:[%s669 + $0x24] sm:$0xf]
        %v680 = vld [vmem:[%s669 + $0x28] sm:$0xf]
        %v681 = vld [vmem:[%s669 + $0x2c] sm:$0xf]
        %v682 = vld [vmem:[%s669 + $0x30] sm:$0xf]
        %v683 = vld [vmem:[%s669 + $0x34] sm:$0xf]
        %v684 = vld [vmem:[%s669 + $0x38] sm:$0xf]
        %v685 = vld [vmem:[%s669 + $0x3c] sm:$0xf]
        %v686 = vld [vmem:[#allocation3 + $0x1] sm:$0xff]
        %v687 = vld [vmem:[#allocation3 + $0x9] sm:$0xff]
        %v688 = vld [vmem:[#allocation3 + $0x11] sm:$0xff]
        %v689 = vpack.c.bf16 %v687, %v686
        %v690 = vpack.c.bf16 %v688, %v688
        %s691 = scalar_lea.vmem [#allocation4], 384
        %v692 = vld [vmem:[%s691] sm:$0xf]
        %v693 = vld [vmem:[%s691 + $0x4] sm:$0xf]
        %v694 = vld [vmem:[%s691 + $0x8] sm:$0xf]
        %v695 = vld [vmem:[%s691 + $0xc] sm:$0xf]
        %v696 = vld [vmem:[%s691 + $0x10] sm:$0xf]
        %v697 = vld [vmem:[%s691 + $0x14] sm:$0xf]
        %v698 = vld [vmem:[%s691 + $0x18] sm:$0xf]
        %v699 = vld [vmem:[%s691 + $0x1c] sm:$0xf]
        %v700 = vld [vmem:[%s691 + $0x20] sm:$0xf]
        %v701 = vld [vmem:[%s691 + $0x24] sm:$0xf]
        %v702 = vld [vmem:[%s691 + $0x28] sm:$0xf]
        %v703 = vld [vmem:[%s691 + $0x2c] sm:$0xf]
        %v704 = vld [vmem:[%s691 + $0x30] sm:$0xf]
        %v705 = vld [vmem:[%s691 + $0x34] sm:$0xf]
        %v706 = vld [vmem:[%s691 + $0x38] sm:$0xf]
        %v707 = vld [vmem:[%s691 + $0x3c] sm:$0xf]
        %v724 = vunpack.c.l.b16 %v692
        %v725 = vunpack.c.l.b16 %v693
        %v726 = vunpack.c.l.b16 %v694
        %v727 = vunpack.c.l.b16 %v695
        %v728 = vunpack.c.l.b16 %v696
        %v729 = vunpack.c.l.b16 %v697
        %v730 = vunpack.c.l.b16 %v698
        %v731 = vunpack.c.l.b16 %v699
        %v732 = vunpack.c.l.b16 %v700
        %v733 = vunpack.c.l.b16 %v701
        %v734 = vunpack.c.l.b16 %v702
        %v735 = vunpack.c.l.b16 %v703
        %v736 = vunpack.c.l.b16 %v704
        %v737 = vunpack.c.l.b16 %v705
        %v738 = vunpack.c.l.b16 %v706
        %v739 = vunpack.c.l.b16 %v707
        %v740 = vpack.c.b16 %v725, %v724
        %v741 = vpack.c.b16 %v727, %v726
        %v742 = vpack.c.b16 %v729, %v728
        %v743 = vpack.c.b16 %v731, %v730
        %v744 = vpack.c.b16 %v733, %v732
        %v745 = vpack.c.b16 %v735, %v734
        %v746 = vpack.c.b16 %v737, %v736
        %v747 = vpack.c.b16 %v739, %v738
        %756 = vmatpush.bf16.msra.mxu0 %v747
        %757 = vmatpush.bf16.msra.mxu0 %v746
        %758 = vmatpush.bf16.msra.mxu0 %v745
        %759 = vmatpush.bf16.msra.mxu0 %v744
        %760 = vmatpush.bf16.msra.mxu0 %v743
        %761 = vmatpush.bf16.msra.mxu0 %v742
        %762 = vmatpush.bf16.msra.mxu0 %v741
        %763 = vmatpush.bf16.msra.mxu0 %v740
        %764 = vmatmul.bf16.gmra.mxu0 %v689
        %v765 = vpop.f32.mrf.mxu0
        %v766 = vadd.f32 0.0, %v765
        %v767 = vpop.f32.mrf.mxu0
        %v768 = vadd.f32 0.0, %v767
        %769 = vmatmul.bf16.gmra.mxu0 %v690
        %v770 = vpop.f32.mrf.mxu0
        %v771 = vadd.f32 0.0, %v770
        %v772 = vpop.f32.mrf.mxu0
        %773 = vdwg.mxu0
        %v790 = vunpack.c.l.b16 %v670
        %v791 = vunpack.c.l.b16 %v671
        %v792 = vunpack.c.l.b16 %v672
        %v793 = vunpack.c.l.b16 %v673
        %v794 = vunpack.c.l.b16 %v674
        %v795 = vunpack.c.l.b16 %v675
        %v796 = vunpack.c.l.b16 %v676
        %v797 = vunpack.c.l.b16 %v677
        %v798 = vunpack.c.l.b16 %v678
        %v799 = vunpack.c.l.b16 %v679
        %v800 = vunpack.c.l.b16 %v680
        %v801 = vunpack.c.l.b16 %v681
        %v802 = vunpack.c.l.b16 %v682
        %v803 = vunpack.c.l.b16 %v683
        %v804 = vunpack.c.l.b16 %v684
        %v805 = vunpack.c.l.b16 %v685
        %v806 = vpack.c.b16 %v791, %v790
        %v807 = vpack.c.b16 %v793, %v792
        %v808 = vpack.c.b16 %v795, %v794
        %v809 = vpack.c.b16 %v797, %v796
        %v810 = vpack.c.b16 %v799, %v798
        %v811 = vpack.c.b16 %v801, %v800
        %v812 = vpack.c.b16 %v803, %v802
        %v813 = vpack.c.b16 %v805, %v804
        %822 = vmatpush.bf16.msra.mxu0 %v813
        %823 = vmatpush.bf16.msra.mxu0 %v812
        %824 = vmatpush.bf16.msra.mxu0 %v811
        %825 = vmatpush.bf16.msra.mxu0 %v810
        %826 = vmatpush.bf16.msra.mxu0 %v809
        %827 = vmatpush.bf16.msra.mxu0 %v808
        %828 = vmatpush.bf16.msra.mxu0 %v807
        %829 = vmatpush.bf16.msra.mxu0 %v806
        %830 = vmatmul.bf16.gmra.mxu0 %v667
        %v831 = vpop.f32.mrf.mxu0
        %v832 = vadd.f32 %v766, %v831
        %v833 = vpop.f32.mrf.mxu0
        %v834 = vadd.f32 %v768, %v833
        %835 = vmatmul.bf16.gmra.mxu0 %v668
        %v836 = vpop.f32.mrf.mxu0
        %v837 = vadd.f32 %v771, %v836
        %v838 = vpop.f32.mrf.mxu0
        %839 = vdwg.mxu0
        %v840 = vld [vmem:[#allocation3 + $0x2] sm:$0xff]
        %v841 = vld [vmem:[#allocation3 + $0xa] sm:$0xff]
        %v842 = vld [vmem:[#allocation3 + $0x12] sm:$0xff]
        %v843 = vpack.c.bf16 %v841, %v840
        %v844 = vpack.c.bf16 %v842, %v842
        %s845 = scalar_lea.vmem [#allocation4], 448
        %v846 = vld [vmem:[%s845] sm:$0xf]
        %v847 = vld [vmem:[%s845 + $0x4] sm:$0xf]
        %v848 = vld [vmem:[%s845 + $0x8] sm:$0xf]
        %v849 = vld [vmem:[%s845 + $0xc] sm:$0xf]
        %v850 = vld [vmem:[%s845 + $0x10] sm:$0xf]
        %v851 = vld [vmem:[%s845 + $0x14] sm:$0xf]
        %v852 = vld [vmem:[%s845 + $0x18] sm:$0xf]
        %v853 = vld [vmem:[%s845 + $0x1c] sm:$0xf]
        %v854 = vld [vmem:[%s845 + $0x20] sm:$0xf]
        %v855 = vld [vmem:[%s845 + $0x24] sm:$0xf]
        %v856 = vld [vmem:[%s845 + $0x28] sm:$0xf]
        %v857 = vld [vmem:[%s845 + $0x2c] sm:$0xf]
        %v858 = vld [vmem:[%s845 + $0x30] sm:$0xf]
        %v859 = vld [vmem:[%s845 + $0x34] sm:$0xf]
        %v860 = vld [vmem:[%s845 + $0x38] sm:$0xf]
        %v861 = vld [vmem:[%s845 + $0x3c] sm:$0xf]
        %v878 = vunpack.c.l.b16 %v846
        %v879 = vunpack.c.l.b16 %v847
        %v880 = vunpack.c.l.b16 %v848
        %v881 = vunpack.c.l.b16 %v849
        %v882 = vunpack.c.l.b16 %v850
        %v883 = vunpack.c.l.b16 %v851
        %v884 = vunpack.c.l.b16 %v852
        %v885 = vunpack.c.l.b16 %v853
        %v886 = vunpack.c.l.b16 %v854
        %v887 = vunpack.c.l.b16 %v855
        %v888 = vunpack.c.l.b16 %v856
        %v889 = vunpack.c.l.b16 %v857
        %v890 = vunpack.c.l.b16 %v858
        %v891 = vunpack.c.l.b16 %v859
        %v892 = vunpack.c.l.b16 %v860
        %v893 = vunpack.c.l.b16 %v861
        %v894 = vpack.c.b16 %v879, %v878
        %v895 = vpack.c.b16 %v881, %v880
        %v896 = vpack.c.b16 %v883, %v882
        %v897 = vpack.c.b16 %v885, %v884
        %v898 = vpack.c.b16 %v887, %v886
        %v899 = vpack.c.b16 %v889, %v888
        %v900 = vpack.c.b16 %v891, %v890
        %v901 = vpack.c.b16 %v893, %v892
        %910 = vmatpush.bf16.msra.mxu0 %v901
        %911 = vmatpush.bf16.msra.mxu0 %v900
        %912 = vmatpush.bf16.msra.mxu0 %v899
        %913 = vmatpush.bf16.msra.mxu0 %v898
        %914 = vmatpush.bf16.msra.mxu0 %v897
        %915 = vmatpush.bf16.msra.mxu0 %v896
        %916 = vmatpush.bf16.msra.mxu0 %v895
        %917 = vmatpush.bf16.msra.mxu0 %v894
        %918 = vmatmul.bf16.gmra.mxu0 %v843
        %v919 = vpop.f32.mrf.mxu0
        %v920 = vadd.f32 0.0, %v919
        %v921 = vpop.f32.mrf.mxu0
        %v922 = vadd.f32 0.0, %v921
        %923 = vmatmul.bf16.gmra.mxu0 %v844
        %v924 = vpop.f32.mrf.mxu0
        %v925 = vadd.f32 0.0, %v924
        %v926 = vpop.f32.mrf.mxu0
        %927 = vdwg.mxu0
        %v928 = vadd.f32 %v832, %v920
        %v929 = vadd.f32 %v834, %v922
        %v930 = vadd.f32 %v837, %v925
        %v931 = vld [vmem:[#allocation3 + $0x3] sm:$0xff]
        %v932 = vld [vmem:[#allocation3 + $0xb] sm:$0xff]
        %v933 = vld [vmem:[#allocation3 + $0x13] sm:$0xff]
        %v934 = vpack.c.bf16 %v932, %v931
        %v935 = vpack.c.bf16 %v933, %v933
        %s936 = scalar_lea.vmem [#allocation4], 512
        %v937 = vld [vmem:[%s936] sm:$0xf]
        %v938 = vld [vmem:[%s936 + $0x4] sm:$0xf]
        %v939 = vld [vmem:[%s936 + $0x8] sm:$0xf]
        %v940 = vld [vmem:[%s936 + $0xc] sm:$0xf]
        %v941 = vld [vmem:[%s936 + $0x10] sm:$0xf]
        %v942 = vld [vmem:[%s936 + $0x14] sm:$0xf]
        %v943 = vld [vmem:[%s936 + $0x18] sm:$0xf]
        %v944 = vld [vmem:[%s936 + $0x1c] sm:$0xf]
        %v945 = vld [vmem:[%s936 + $0x20] sm:$0xf]
        %v946 = vld [vmem:[%s936 + $0x24] sm:$0xf]
        %v947 = vld [vmem:[%s936 + $0x28] sm:$0xf]
        %v948 = vld [vmem:[%s936 + $0x2c] sm:$0xf]
        %v949 = vld [vmem:[%s936 + $0x30] sm:$0xf]
        %v950 = vld [vmem:[%s936 + $0x34] sm:$0xf]
        %v951 = vld [vmem:[%s936 + $0x38] sm:$0xf]
        %v952 = vld [vmem:[%s936 + $0x3c] sm:$0xf]
        %v969 = vunpack.c.l.b16 %v937
        %v970 = vunpack.c.l.b16 %v938
        %v971 = vunpack.c.l.b16 %v939
        %v972 = vunpack.c.l.b16 %v940
        %v973 = vunpack.c.l.b16 %v941
        %v974 = vunpack.c.l.b16 %v942
        %v975 = vunpack.c.l.b16 %v943
        %v976 = vunpack.c.l.b16 %v944
        %v977 = vunpack.c.l.b16 %v945
        %v978 = vunpack.c.l.b16 %v946
        %v979 = vunpack.c.l.b16 %v947
        %v980 = vunpack.c.l.b16 %v948
        %v981 = vunpack.c.l.b16 %v949
        %v982 = vunpack.c.l.b16 %v950
        %v983 = vunpack.c.l.b16 %v951
        %v984 = vunpack.c.l.b16 %v952
        %v985 = vpack.c.b16 %v970, %v969
        %v986 = vpack.c.b16 %v972, %v971
        %v987 = vpack.c.b16 %v974, %v973
        %v988 = vpack.c.b16 %v976, %v975
        %v989 = vpack.c.b16 %v978, %v977
        %v990 = vpack.c.b16 %v980, %v979
        %v991 = vpack.c.b16 %v982, %v981
        %v992 = vpack.c.b16 %v984, %v983
        %1001 = vmatpush.bf16.msra.mxu0 %v992
        %1002 = vmatpush.bf16.msra.mxu0 %v991
        %1003 = vmatpush.bf16.msra.mxu0 %v990
        %1004 = vmatpush.bf16.msra.mxu0 %v989
        %1005 = vmatpush.bf16.msra.mxu0 %v988
        %1006 = vmatpush.bf16.msra.mxu0 %v987
        %1007 = vmatpush.bf16.msra.mxu0 %v986
        %1008 = vmatpush.bf16.msra.mxu0 %v985
        %1009 = vmatmul.bf16.gmra.mxu0 %v934
        %v1010 = vpop.f32.mrf.mxu0
        %v1011 = vadd.f32 0.0, %v1010
        %v1012 = vpop.f32.mrf.mxu0
        %v1013 = vadd.f32 0.0, %v1012
        %1014 = vmatmul.bf16.gmra.mxu0 %v935
        %v1015 = vpop.f32.mrf.mxu0
        %v1016 = vadd.f32 0.0, %v1015
        %v1017 = vpop.f32.mrf.mxu0
        %1018 = vdwg.mxu0
        %v1019 = vadd.f32 %v928, %v1011
        %v1020 = vadd.f32 %v929, %v1013
        %v1021 = vadd.f32 %v930, %v1016
        %v1022 = vld [vmem:[#allocation3 + $0x4] sm:$0xff]
        %v1023 = vld [vmem:[#allocation3 + $0xc] sm:$0xff]
        %v1024 = vld [vmem:[#allocation3 + $0x14] sm:$0xff]
        %v1025 = vpack.c.bf16 %v1023, %v1022
        %v1026 = vpack.c.bf16 %v1024, %v1024
        %s1027 = scalar_lea.vmem [#allocation4], 576
        %v1028 = vld [vmem:[%s1027] sm:$0xf]
        %v1029 = vld [vmem:[%s1027 + $0x4] sm:$0xf]
        %v1030 = vld [vmem:[%s1027 + $0x8] sm:$0xf]
        %v1031 = vld [vmem:[%s1027 + $0xc] sm:$0xf]
        %v1032 = vld [vmem:[%s1027 + $0x10] sm:$0xf]
        %v1033 = vld [vmem:[%s1027 + $0x14] sm:$0xf]
        %v1034 = vld [vmem:[%s1027 + $0x18] sm:$0xf]
        %v1035 = vld [vmem:[%s1027 + $0x1c] sm:$0xf]
        %v1036 = vld [vmem:[%s1027 + $0x20] sm:$0xf]
        %v1037 = vld [vmem:[%s1027 + $0x24] sm:$0xf]
        %v1038 = vld [vmem:[%s1027 + $0x28] sm:$0xf]
        %v1039 = vld [vmem:[%s1027 + $0x2c] sm:$0xf]
        %v1040 = vld [vmem:[%s1027 + $0x30] sm:$0xf]
        %v1041 = vld [vmem:[%s1027 + $0x34] sm:$0xf]
        %v1042 = vld [vmem:[%s1027 + $0x38] sm:$0xf]
        %v1043 = vld [vmem:[%s1027 + $0x3c] sm:$0xf]
        %v1060 = vunpack.c.l.b16 %v1028
        %v1061 = vunpack.c.l.b16 %v1029
        %v1062 = vunpack.c.l.b16 %v1030
        %v1063 = vunpack.c.l.b16 %v1031
        %v1064 = vunpack.c.l.b16 %v1032
        %v1065 = vunpack.c.l.b16 %v1033
        %v1066 = vunpack.c.l.b16 %v1034
        %v1067 = vunpack.c.l.b16 %v1035
        %v1068 = vunpack.c.l.b16 %v1036
        %v1069 = vunpack.c.l.b16 %v1037
        %v1070 = vunpack.c.l.b16 %v1038
        %v1071 = vunpack.c.l.b16 %v1039
        %v1072 = vunpack.c.l.b16 %v1040
        %v1073 = vunpack.c.l.b16 %v1041
        %v1074 = vunpack.c.l.b16 %v1042
        %v1075 = vunpack.c.l.b16 %v1043
        %v1076 = vpack.c.b16 %v1061, %v1060
        %v1077 = vpack.c.b16 %v1063, %v1062
        %v1078 = vpack.c.b16 %v1065, %v1064
        %v1079 = vpack.c.b16 %v1067, %v1066
        %v1080 = vpack.c.b16 %v1069, %v1068
        %v1081 = vpack.c.b16 %v1071, %v1070
        %v1082 = vpack.c.b16 %v1073, %v1072
        %v1083 = vpack.c.b16 %v1075, %v1074
        %1092 = vmatpush.bf16.msra.mxu0 %v1083
        %1093 = vmatpush.bf16.msra.mxu0 %v1082
        %1094 = vmatpush.bf16.msra.mxu0 %v1081
        %1095 = vmatpush.bf16.msra.mxu0 %v1080
        %1096 = vmatpush.bf16.msra.mxu0 %v1079
        %1097 = vmatpush.bf16.msra.mxu0 %v1078
        %1098 = vmatpush.bf16.msra.mxu0 %v1077
        %1099 = vmatpush.bf16.msra.mxu0 %v1076
        %1100 = vmatmul.bf16.gmra.mxu0 %v1025
        %v1101 = vpop.f32.mrf.mxu0
        %v1102 = vadd.f32 0.0, %v1101
        %v1103 = vpop.f32.mrf.mxu0
        %v1104 = vadd.f32 0.0, %v1103
        %1105 = vmatmul.bf16.gmra.mxu0 %v1026
        %v1106 = vpop.f32.mrf.mxu0
        %v1107 = vadd.f32 0.0, %v1106
        %v1108 = vpop.f32.mrf.mxu0
        %1109 = vdwg.mxu0
        %v1110 = vadd.f32 %v1019, %v1102
        %v1111 = vadd.f32 %v1020, %v1104
        %v1112 = vadd.f32 %v1021, %v1107
        %v1114 = vperm.slane %v663, 0
        %v1116 = vadd.f32 %v1110, %v1114
        %v1117 = vadd.f32 %v1111, %v1114
        %v1118 = vadd.f32 %v1112, %v1114
        %v1119 = vtanh.pop %v1116
        %v1120 = vtanh.pop %v1117
        %v1121 = vtanh.pop %v1118
        %1122 = vst [vmem:[#allocation2 + $0x2] sm:$0xff] %v1119
        %1123 = vst [vmem:[#allocation2 + $0xa] sm:$0xff] %v1120
        %1124 = vst [vmem:[#allocation2 + $0x12] sm:$0xff] %v1121
        %s1125 = scalar_lea.vmem %s2, 2
        %v1126 = vld [vmem:[%s1125] sm:$0x1]
        %v1127 = vld [vmem:[#allocation2] sm:$0xff]
        %v1128 = vld [vmem:[#allocation2 + $0x8] sm:$0xff]
        %v1129 = vld [vmem:[#allocation2 + $0x10] sm:$0xff]
        %v1130 = vpack.c.bf16 %v1128, %v1127
        %v1131 = vpack.c.bf16 %v1129, %v1129
        %s1132 = scalar_lea.vmem [#allocation4], 640
        %v1133 = vld [vmem:[%s1132] sm:$0xf]
        %v1134 = vld [vmem:[%s1132 + $0x4] sm:$0xf]
        %v1135 = vld [vmem:[%s1132 + $0x8] sm:$0xf]
        %v1136 = vld [vmem:[%s1132 + $0xc] sm:$0xf]
        %v1137 = vld [vmem:[%s1132 + $0x10] sm:$0xf]
        %v1138 = vld [vmem:[%s1132 + $0x14] sm:$0xf]
        %v1139 = vld [vmem:[%s1132 + $0x18] sm:$0xf]
        %v1140 = vld [vmem:[%s1132 + $0x1c] sm:$0xf]
        %v1141 = vld [vmem:[%s1132 + $0x20] sm:$0xf]
        %v1142 = vld [vmem:[%s1132 + $0x24] sm:$0xf]
        %v1143 = vld [vmem:[%s1132 + $0x28] sm:$0xf]
        %v1144 = vld [vmem:[%s1132 + $0x2c] sm:$0xf]
        %v1145 = vld [vmem:[%s1132 + $0x30] sm:$0xf]
        %v1146 = vld [vmem:[%s1132 + $0x34] sm:$0xf]
        %v1147 = vld [vmem:[%s1132 + $0x38] sm:$0xf]
        %v1148 = vld [vmem:[%s1132 + $0x3c] sm:$0xf]
        %v1149 = vld [vmem:[#allocation2 + $0x1] sm:$0xff]
        %v1150 = vld [vmem:[#allocation2 + $0x9] sm:$0xff]
        %v1151 = vld [vmem:[#allocation2 + $0x11] sm:$0xff]
        %v1152 = vpack.c.bf16 %v1150, %v1149
        %v1153 = vpack.c.bf16 %v1151, %v1151
        %s1154 = scalar_lea.vmem [#allocation4], 704
        %v1155 = vld [vmem:[%s1154] sm:$0xf]
        %v1156 = vld [vmem:[%s1154 + $0x4] sm:$0xf]
        %v1157 = vld [vmem:[%s1154 + $0x8] sm:$0xf]
        %v1158 = vld [vmem:[%s1154 + $0xc] sm:$0xf]
        %v1159 = vld [vmem:[%s1154 + $0x10] sm:$0xf]
        %v1160 = vld [vmem:[%s1154 + $0x14] sm:$0xf]
        %v1161 = vld [vmem:[%s1154 + $0x18] sm:$0xf]
        %v1162 = vld [vmem:[%s1154 + $0x1c] sm:$0xf]
        %v1163 = vld [vmem:[%s1154 + $0x20] sm:$0xf]
        %v1164 = vld [vmem:[%s1154 + $0x24] sm:$0xf]
        %v1165 = vld [vmem:[%s1154 + $0x28] sm:$0xf]
        %v1166 = vld [vmem:[%s1154 + $0x2c] sm:$0xf]
        %v1167 = vld [vmem:[%s1154 + $0x30] sm:$0xf]
        %v1168 = vld [vmem:[%s1154 + $0x34] sm:$0xf]
        %v1169 = vld [vmem:[%s1154 + $0x38] sm:$0xf]
        %v1170 = vld [vmem:[%s1154 + $0x3c] sm:$0xf]
        %v1187 = vunpack.c.l.b16 %v1155
        %v1188 = vunpack.c.l.b16 %v1156
        %v1189 = vunpack.c.l.b16 %v1157
        %v1190 = vunpack.c.l.b16 %v1158
        %v1191 = vunpack.c.l.b16 %v1159
        %v1192 = vunpack.c.l.b16 %v1160
        %v1193 = vunpack.c.l.b16 %v1161
        %v1194 = vunpack.c.l.b16 %v1162
        %v1195 = vunpack.c.l.b16 %v1163
        %v1196 = vunpack.c.l.b16 %v1164
        %v1197 = vunpack.c.l.b16 %v1165
        %v1198 = vunpack.c.l.b16 %v1166
        %v1199 = vunpack.c.l.b16 %v1167
        %v1200 = vunpack.c.l.b16 %v1168
        %v1201 = vunpack.c.l.b16 %v1169
        %v1202 = vunpack.c.l.b16 %v1170
        %v1203 = vpack.c.b16 %v1188, %v1187
        %v1204 = vpack.c.b16 %v1190, %v1189
        %v1205 = vpack.c.b16 %v1192, %v1191
        %v1206 = vpack.c.b16 %v1194, %v1193
        %v1207 = vpack.c.b16 %v1196, %v1195
        %v1208 = vpack.c.b16 %v1198, %v1197
        %v1209 = vpack.c.b16 %v1200, %v1199
        %v1210 = vpack.c.b16 %v1202, %v1201
        %1219 = vmatpush.bf16.msra.mxu0 %v1210
        %1220 = vmatpush.bf16.msra.mxu0 %v1209
        %1221 = vmatpush.bf16.msra.mxu0 %v1208
        %1222 = vmatpush.bf16.msra.mxu0 %v1207
        %1223 = vmatpush.bf16.msra.mxu0 %v1206
        %1224 = vmatpush.bf16.msra.mxu0 %v1205
        %1225 = vmatpush.bf16.msra.mxu0 %v1204
        %1226 = vmatpush.bf16.msra.mxu0 %v1203
        %1227 = vmatmul.bf16.gmra.mxu0 %v1152
        %v1228 = vpop.f32.mrf.mxu0
        %v1229 = vadd.f32 0.0, %v1228
        %v1230 = vpop.f32.mrf.mxu0
        %v1231 = vadd.f32 0.0, %v1230
        %1232 = vmatmul.bf16.gmra.mxu0 %v1153
        %v1233 = vpop.f32.mrf.mxu0
        %v1234 = vadd.f32 0.0, %v1233
        %v1235 = vpop.f32.mrf.mxu0
        %1236 = vdwg.mxu0
        %v1253 = vunpack.c.l.b16 %v1133
        %v1254 = vunpack.c.l.b16 %v1134
        %v1255 = vunpack.c.l.b16 %v1135
        %v1256 = vunpack.c.l.b16 %v1136
        %v1257 = vunpack.c.l.b16 %v1137
        %v1258 = vunpack.c.l.b16 %v1138
        %v1259 = vunpack.c.l.b16 %v1139
        %v1260 = vunpack.c.l.b16 %v1140
        %v1261 = vunpack.c.l.b16 %v1141
        %v1262 = vunpack.c.l.b16 %v1142
        %v1263 = vunpack.c.l.b16 %v1143
        %v1264 = vunpack.c.l.b16 %v1144
        %v1265 = vunpack.c.l.b16 %v1145
        %v1266 = vunpack.c.l.b16 %v1146
        %v1267 = vunpack.c.l.b16 %v1147
        %v1268 = vunpack.c.l.b16 %v1148
        %v1269 = vpack.c.b16 %v1254, %v1253
        %v1270 = vpack.c.b16 %v1256, %v1255
        %v1271 = vpack.c.b16 %v1258, %v1257
        %v1272 = vpack.c.b16 %v1260, %v1259
        %v1273 = vpack.c.b16 %v1262, %v1261
        %v1274 = vpack.c.b16 %v1264, %v1263
        %v1275 = vpack.c.b16 %v1266, %v1265
        %v1276 = vpack.c.b16 %v1268, %v1267
        %1285 = vmatpush.bf16.msra.mxu0 %v1276
        %1286 = vmatpush.bf16.msra.mxu0 %v1275
        %1287 = vmatpush.bf16.msra.mxu0 %v1274
        %1288 = vmatpush.bf16.msra.mxu0 %v1273
        %1289 = vmatpush.bf16.msra.mxu0 %v1272
        %1290 = vmatpush.bf16.msra.mxu0 %v1271
        %1291 = vmatpush.bf16.msra.mxu0 %v1270
        %1292 = vmatpush.bf16.msra.mxu0 %v1269
        %1293 = vmatmul.bf16.gmra.mxu0 %v1130
        %v1294 = vpop.f32.mrf.mxu0
        %v1295 = vadd.f32 %v1229, %v1294
        %v1296 = vpop.f32.mrf.mxu0
        %v1297 = vadd.f32 %v1231, %v1296
        %1298 = vmatmul.bf16.gmra.mxu0 %v1131
        %v1299 = vpop.f32.mrf.mxu0
        %v1300 = vadd.f32 %v1234, %v1299
        %v1301 = vpop.f32.mrf.mxu0
        %1302 = vdwg.mxu0
        %v1303 = vld [vmem:[#allocation2 + $0x2] sm:$0xff]
        %v1304 = vld [vmem:[#allocation2 + $0xa] sm:$0xff]
        %v1305 = vld [vmem:[#allocation2 + $0x12] sm:$0xff]
        %v1306 = vpack.c.bf16 %v1304, %v1303
        %v1307 = vpack.c.bf16 %v1305, %v1305
        %s1308 = scalar_lea.vmem [#allocation4], 768
        %v1309 = vld [vmem:[%s1308] sm:$0xf]
        %v1310 = vld [vmem:[%s1308 + $0x4] sm:$0xf]
        %v1311 = vld [vmem:[%s1308 + $0x8] sm:$0xf]
        %v1312 = vld [vmem:[%s1308 + $0xc] sm:$0xf]
        %v1313 = vld [vmem:[%s1308 + $0x10] sm:$0xf]
        %v1314 = vld [vmem:[%s1308 + $0x14] sm:$0xf]
        %v1315 = vld [vmem:[%s1308 + $0x18] sm:$0xf]
        %v1316 = vld [vmem:[%s1308 + $0x1c] sm:$0xf]
        %v1317 = vld [vmem:[%s1308 + $0x20] sm:$0xf]
        %v1318 = vld [vmem:[%s1308 + $0x24] sm:$0xf]
        %v1319 = vld [vmem:[%s1308 + $0x28] sm:$0xf]
        %v1320 = vld [vmem:[%s1308 + $0x2c] sm:$0xf]
        %v1321 = vld [vmem:[%s1308 + $0x30] sm:$0xf]
        %v1322 = vld [vmem:[%s1308 + $0x34] sm:$0xf]
        %v1323 = vld [vmem:[%s1308 + $0x38] sm:$0xf]
        %v1324 = vld [vmem:[%s1308 + $0x3c] sm:$0xf]
        %v1341 = vunpack.c.l.b16 %v1309
        %v1342 = vunpack.c.l.b16 %v1310
        %v1343 = vunpack.c.l.b16 %v1311
        %v1344 = vunpack.c.l.b16 %v1312
        %v1345 = vunpack.c.l.b16 %v1313
        %v1346 = vunpack.c.l.b16 %v1314
        %v1347 = vunpack.c.l.b16 %v1315
        %v1348 = vunpack.c.l.b16 %v1316
        %v1349 = vunpack.c.l.b16 %v1317
        %v1350 = vunpack.c.l.b16 %v1318
        %v1351 = vunpack.c.l.b16 %v1319
        %v1352 = vunpack.c.l.b16 %v1320
        %v1353 = vunpack.c.l.b16 %v1321
        %v1354 = vunpack.c.l.b16 %v1322
        %v1355 = vunpack.c.l.b16 %v1323
        %v1356 = vunpack.c.l.b16 %v1324
        %v1357 = vpack.c.b16 %v1342, %v1341
        %v1358 = vpack.c.b16 %v1344, %v1343
        %v1359 = vpack.c.b16 %v1346, %v1345
        %v1360 = vpack.c.b16 %v1348, %v1347
        %v1361 = vpack.c.b16 %v1350, %v1349
        %v1362 = vpack.c.b16 %v1352, %v1351
        %v1363 = vpack.c.b16 %v1354, %v1353
        %v1364 = vpack.c.b16 %v1356, %v1355
        %1373 = vmatpush.bf16.msra.mxu0 %v1364
        %1374 = vmatpush.bf16.msra.mxu0 %v1363
        %1375 = vmatpush.bf16.msra.mxu0 %v1362
        %1376 = vmatpush.bf16.msra.mxu0 %v1361
        %1377 = vmatpush.bf16.msra.mxu0 %v1360
        %1378 = vmatpush.bf16.msra.mxu0 %v1359
        %1379 = vmatpush.bf16.msra.mxu0 %v1358
        %1380 = vmatpush.bf16.msra.mxu0 %v1357
        %1381 = vmatmul.bf16.gmra.mxu0 %v1306
        %v1382 = vpop.f32.mrf.mxu0
        %v1383 = vadd.f32 0.0, %v1382
        %v1384 = vpop.f32.mrf.mxu0
        %v1385 = vadd.f32 0.0, %v1384
        %1386 = vmatmul.bf16.gmra.mxu0 %v1307
        %v1387 = vpop.f32.mrf.mxu0
        %v1388 = vadd.f32 0.0, %v1387
        %v1389 = vpop.f32.mrf.mxu0
        %1390 = vdwg.mxu0
        %v1391 = vadd.f32 %v1295, %v1383
        %v1392 = vadd.f32 %v1297, %v1385
        %v1393 = vadd.f32 %v1300, %v1388
        %v1394 = vld [vmem:[#allocation2 + $0x3] sm:$0xff]
        %v1395 = vld [vmem:[#allocation2 + $0xb] sm:$0xff]
        %v1396 = vld [vmem:[#allocation2 + $0x13] sm:$0xff]
        %v1397 = vpack.c.bf16 %v1395, %v1394
        %v1398 = vpack.c.bf16 %v1396, %v1396
        %s1399 = scalar_lea.vmem [#allocation4], 832
        %v1400 = vld [vmem:[%s1399] sm:$0xf]
        %v1401 = vld [vmem:[%s1399 + $0x4] sm:$0xf]
        %v1402 = vld [vmem:[%s1399 + $0x8] sm:$0xf]
        %v1403 = vld [vmem:[%s1399 + $0xc] sm:$0xf]
        %v1404 = vld [vmem:[%s1399 + $0x10] sm:$0xf]
        %v1405 = vld [vmem:[%s1399 + $0x14] sm:$0xf]
        %v1406 = vld [vmem:[%s1399 + $0x18] sm:$0xf]
        %v1407 = vld [vmem:[%s1399 + $0x1c] sm:$0xf]
        %v1408 = vld [vmem:[%s1399 + $0x20] sm:$0xf]
        %v1409 = vld [vmem:[%s1399 + $0x24] sm:$0xf]
        %v1410 = vld [vmem:[%s1399 + $0x28] sm:$0xf]
        %v1411 = vld [vmem:[%s1399 + $0x2c] sm:$0xf]
        %v1412 = vld [vmem:[%s1399 + $0x30] sm:$0xf]
        %v1413 = vld [vmem:[%s1399 + $0x34] sm:$0xf]
        %v1414 = vld [vmem:[%s1399 + $0x38] sm:$0xf]
        %v1415 = vld [vmem:[%s1399 + $0x3c] sm:$0xf]
        %v1432 = vunpack.c.l.b16 %v1400
        %v1433 = vunpack.c.l.b16 %v1401
        %v1434 = vunpack.c.l.b16 %v1402
        %v1435 = vunpack.c.l.b16 %v1403
        %v1436 = vunpack.c.l.b16 %v1404
        %v1437 = vunpack.c.l.b16 %v1405
        %v1438 = vunpack.c.l.b16 %v1406
        %v1439 = vunpack.c.l.b16 %v1407
        %v1440 = vunpack.c.l.b16 %v1408
        %v1441 = vunpack.c.l.b16 %v1409
        %v1442 = vunpack.c.l.b16 %v1410
        %v1443 = vunpack.c.l.b16 %v1411
        %v1444 = vunpack.c.l.b16 %v1412
        %v1445 = vunpack.c.l.b16 %v1413
        %v1446 = vunpack.c.l.b16 %v1414
        %v1447 = vunpack.c.l.b16 %v1415
        %v1448 = vpack.c.b16 %v1433, %v1432
        %v1449 = vpack.c.b16 %v1435, %v1434
        %v1450 = vpack.c.b16 %v1437, %v1436
        %v1451 = vpack.c.b16 %v1439, %v1438
        %v1452 = vpack.c.b16 %v1441, %v1440
        %v1453 = vpack.c.b16 %v1443, %v1442
        %v1454 = vpack.c.b16 %v1445, %v1444
        %v1455 = vpack.c.b16 %v1447, %v1446
        %1464 = vmatpush.bf16.msra.mxu0 %v1455
        %1465 = vmatpush.bf16.msra.mxu0 %v1454
        %1466 = vmatpush.bf16.msra.mxu0 %v1453
        %1467 = vmatpush.bf16.msra.mxu0 %v1452
        %1468 = vmatpush.bf16.msra.mxu0 %v1451
        %1469 = vmatpush.bf16.msra.mxu0 %v1450
        %1470 = vmatpush.bf16.msra.mxu0 %v1449
        %1471 = vmatpush.bf16.msra.mxu0 %v1448
        %1472 = vmatmul.bf16.gmra.mxu0 %v1397
        %v1473 = vpop.f32.mrf.mxu0
        %v1474 = vadd.f32 0.0, %v1473
        %v1475 = vpop.f32.mrf.mxu0
        %v1476 = vadd.f32 0.0, %v1475
        %1477 = vmatmul.bf16.gmra.mxu0 %v1398
        %v1478 = vpop.f32.mrf.mxu0
        %v1479 = vadd.f32 0.0, %v1478
        %v1480 = vpop.f32.mrf.mxu0
        %1481 = vdwg.mxu0
        %v1482 = vadd.f32 %v1391, %v1474
        %v1483 = vadd.f32 %v1392, %v1476
        %v1484 = vadd.f32 %v1393, %v1479
        %v1485 = vld [vmem:[#allocation2 + $0x4] sm:$0xff]
        %v1486 = vld [vmem:[#allocation2 + $0xc] sm:$0xff]
        %v1487 = vld [vmem:[#allocation2 + $0x14] sm:$0xff]
        %v1488 = vpack.c.bf16 %v1486, %v1485
        %v1489 = vpack.c.bf16 %v1487, %v1487
        %s1490 = scalar_lea.vmem [#allocation4], 896
        %v1491 = vld [vmem:[%s1490] sm:$0xf]
        %v1492 = vld [vmem:[%s1490 + $0x4] sm:$0xf]
        %v1493 = vld [vmem:[%s1490 + $0x8] sm:$0xf]
        %v1494 = vld [vmem:[%s1490 + $0xc] sm:$0xf]
        %v1495 = vld [vmem:[%s1490 + $0x10] sm:$0xf]
        %v1496 = vld [vmem:[%s1490 + $0x14] sm:$0xf]
        %v1497 = vld [vmem:[%s1490 + $0x18] sm:$0xf]
        %v1498 = vld [vmem:[%s1490 + $0x1c] sm:$0xf]
        %v1499 = vld [vmem:[%s1490 + $0x20] sm:$0xf]
        %v1500 = vld [vmem:[%s1490 + $0x24] sm:$0xf]
        %v1501 = vld [vmem:[%s1490 + $0x28] sm:$0xf]
        %v1502 = vld [vmem:[%s1490 + $0x2c] sm:$0xf]
        %v1503 = vld [vmem:[%s1490 + $0x30] sm:$0xf]
        %v1504 = vld [vmem:[%s1490 + $0x34] sm:$0xf]
        %v1505 = vld [vmem:[%s1490 + $0x38] sm:$0xf]
        %v1506 = vld [vmem:[%s1490 + $0x3c] sm:$0xf]
        %v1523 = vunpack.c.l.b16 %v1491
        %v1524 = vunpack.c.l.b16 %v1492
        %v1525 = vunpack.c.l.b16 %v1493
        %v1526 = vunpack.c.l.b16 %v1494
        %v1527 = vunpack.c.l.b16 %v1495
        %v1528 = vunpack.c.l.b16 %v1496
        %v1529 = vunpack.c.l.b16 %v1497
        %v1530 = vunpack.c.l.b16 %v1498
        %v1531 = vunpack.c.l.b16 %v1499
        %v1532 = vunpack.c.l.b16 %v1500
        %v1533 = vunpack.c.l.b16 %v1501
        %v1534 = vunpack.c.l.b16 %v1502
        %v1535 = vunpack.c.l.b16 %v1503
        %v1536 = vunpack.c.l.b16 %v1504
        %v1537 = vunpack.c.l.b16 %v1505
        %v1538 = vunpack.c.l.b16 %v1506
        %v1539 = vpack.c.b16 %v1524, %v1523
        %v1540 = vpack.c.b16 %v1526, %v1525
        %v1541 = vpack.c.b16 %v1528, %v1527
        %v1542 = vpack.c.b16 %v1530, %v1529
        %v1543 = vpack.c.b16 %v1532, %v1531
        %v1544 = vpack.c.b16 %v1534, %v1533
        %v1545 = vpack.c.b16 %v1536, %v1535
        %v1546 = vpack.c.b16 %v1538, %v1537
        %1555 = vmatpush.bf16.msra.mxu0 %v1546
        %1556 = vmatpush.bf16.msra.mxu0 %v1545
        %1557 = vmatpush.bf16.msra.mxu0 %v1544
        %1558 = vmatpush.bf16.msra.mxu0 %v1543
        %1559 = vmatpush.bf16.msra.mxu0 %v1542
        %1560 = vmatpush.bf16.msra.mxu0 %v1541
        %1561 = vmatpush.bf16.msra.mxu0 %v1540
        %1562 = vmatpush.bf16.msra.mxu0 %v1539
        %1563 = vmatmul.bf16.gmra.mxu0 %v1488
        %v1564 = vpop.f32.mrf.mxu0
        %v1565 = vadd.f32 0.0, %v1564
        %v1566 = vpop.f32.mrf.mxu0
        %v1567 = vadd.f32 0.0, %v1566
        %1568 = vmatmul.bf16.gmra.mxu0 %v1489
        %v1569 = vpop.f32.mrf.mxu0
        %v1570 = vadd.f32 0.0, %v1569
        %v1571 = vpop.f32.mrf.mxu0
        %1572 = vdwg.mxu0
        %v1573 = vadd.f32 %v1482, %v1565
        %v1574 = vadd.f32 %v1483, %v1567
        %v1575 = vadd.f32 %v1484, %v1570
        %v1577 = vperm.slane %v1126, 0
        %v1579 = vadd.f32 %v1573, %v1577
        %v1580 = vadd.f32 %v1574, %v1577
        %v1581 = vadd.f32 %v1575, %v1577
        %v1582 = vtanh.pop %v1579
        %v1583 = vtanh.pop %v1580
        %v1584 = vtanh.pop %v1581
        %1585 = vst [vmem:[#allocation3 + $0x2] sm:$0xff] %v1582
        %1586 = vst [vmem:[#allocation3 + $0xa] sm:$0xff] %v1583
        %1587 = vst [vmem:[#allocation3 + $0x12] sm:$0xff] %v1584
        %s1588 = scalar_lea.vmem %s2, 3
        %v1589 = vld [vmem:[%s1588] sm:$0x1]
        %v1590 = vld [vmem:[#allocation3] sm:$0xff]
        %v1591 = vld [vmem:[#allocation3 + $0x8] sm:$0xff]
        %v1592 = vld [vmem:[#allocation3 + $0x10] sm:$0xff]
        %v1593 = vpack.c.bf16 %v1591, %v1590
        %v1594 = vpack.c.bf16 %v1592, %v1592
        %s1595 = scalar_lea.vmem [#allocation4], 960
        %v1596 = vld [vmem:[%s1595] sm:$0xf]
        %v1597 = vld [vmem:[%s1595 + $0x4] sm:$0xf]
        %v1598 = vld [vmem:[%s1595 + $0x8] sm:$0xf]
        %v1599 = vld [vmem:[%s1595 + $0xc] sm:$0xf]
        %v1600 = vld [vmem:[%s1595 + $0x10] sm:$0xf]
        %v1601 = vld [vmem:[%s1595 + $0x14] sm:$0xf]
        %v1602 = vld [vmem:[%s1595 + $0x18] sm:$0xf]
        %v1603 = vld [vmem:[%s1595 + $0x1c] sm:$0xf]
        %v1604 = vld [vmem:[%s1595 + $0x20] sm:$0xf]
        %v1605 = vld [vmem:[%s1595 + $0x24] sm:$0xf]
        %v1606 = vld [vmem:[%s1595 + $0x28] sm:$0xf]
        %v1607 = vld [vmem:[%s1595 + $0x2c] sm:$0xf]
        %v1608 = vld [vmem:[%s1595 + $0x30] sm:$0xf]
        %v1609 = vld [vmem:[%s1595 + $0x34] sm:$0xf]
        %v1610 = vld [vmem:[%s1595 + $0x38] sm:$0xf]
        %v1611 = vld [vmem:[%s1595 + $0x3c] sm:$0xf]
        %v1612 = vld [vmem:[#allocation3 + $0x1] sm:$0xff]
        %v1613 = vld [vmem:[#allocation3 + $0x9] sm:$0xff]
        %v1614 = vld [vmem:[#allocation3 + $0x11] sm:$0xff]
        %v1615 = vpack.c.bf16 %v1613, %v1612
        %v1616 = vpack.c.bf16 %v1614, %v1614
        %s1617 = scalar_lea.vmem [#allocation4], 1024
        %v1618 = vld [vmem:[%s1617] sm:$0xf]
        %v1619 = vld [vmem:[%s1617 + $0x4] sm:$0xf]
        %v1620 = vld [vmem:[%s1617 + $0x8] sm:$0xf]
        %v1621 = vld [vmem:[%s1617 + $0xc] sm:$0xf]
        %v1622 = vld [vmem:[%s1617 + $0x10] sm:$0xf]
        %v1623 = vld [vmem:[%s1617 + $0x14] sm:$0xf]
        %v1624 = vld [vmem:[%s1617 + $0x18] sm:$0xf]
        %v1625 = vld [vmem:[%s1617 + $0x1c] sm:$0xf]
        %v1626 = vld [vmem:[%s1617 + $0x20] sm:$0xf]
        %v1627 = vld [vmem:[%s1617 + $0x24] sm:$0xf]
        %v1628 = vld [vmem:[%s1617 + $0x28] sm:$0xf]
        %v1629 = vld [vmem:[%s1617 + $0x2c] sm:$0xf]
        %v1630 = vld [vmem:[%s1617 + $0x30] sm:$0xf]
        %v1631 = vld [vmem:[%s1617 + $0x34] sm:$0xf]
        %v1632 = vld [vmem:[%s1617 + $0x38] sm:$0xf]
        %v1633 = vld [vmem:[%s1617 + $0x3c] sm:$0xf]
        %v1650 = vunpack.c.l.b16 %v1618
        %v1651 = vunpack.c.l.b16 %v1619
        %v1652 = vunpack.c.l.b16 %v1620
        %v1653 = vunpack.c.l.b16 %v1621
        %v1654 = vunpack.c.l.b16 %v1622
        %v1655 = vunpack.c.l.b16 %v1623
        %v1656 = vunpack.c.l.b16 %v1624
        %v1657 = vunpack.c.l.b16 %v1625
        %v1658 = vunpack.c.l.b16 %v1626
        %v1659 = vunpack.c.l.b16 %v1627
        %v1660 = vunpack.c.l.b16 %v1628
        %v1661 = vunpack.c.l.b16 %v1629
        %v1662 = vunpack.c.l.b16 %v1630
        %v1663 = vunpack.c.l.b16 %v1631
        %v1664 = vunpack.c.l.b16 %v1632
        %v1665 = vunpack.c.l.b16 %v1633
        %v1666 = vpack.c.b16 %v1651, %v1650
        %v1667 = vpack.c.b16 %v1653, %v1652
        %v1668 = vpack.c.b16 %v1655, %v1654
        %v1669 = vpack.c.b16 %v1657, %v1656
        %v1670 = vpack.c.b16 %v1659, %v1658
        %v1671 = vpack.c.b16 %v1661, %v1660
        %v1672 = vpack.c.b16 %v1663, %v1662
        %v1673 = vpack.c.b16 %v1665, %v1664
        %1682 = vmatpush.bf16.msra.mxu0 %v1673
        %1683 = vmatpush.bf16.msra.mxu0 %v1672
        %1684 = vmatpush.bf16.msra.mxu0 %v1671
        %1685 = vmatpush.bf16.msra.mxu0 %v1670
        %1686 = vmatpush.bf16.msra.mxu0 %v1669
        %1687 = vmatpush.bf16.msra.mxu0 %v1668
        %1688 = vmatpush.bf16.msra.mxu0 %v1667
        %1689 = vmatpush.bf16.msra.mxu0 %v1666
        %1690 = vmatmul.bf16.gmra.mxu0 %v1615
        %v1691 = vpop.f32.mrf.mxu0
        %v1692 = vadd.f32 0.0, %v1691
        %v1693 = vpop.f32.mrf.mxu0
        %v1694 = vadd.f32 0.0, %v1693
        %1695 = vmatmul.bf16.gmra.mxu0 %v1616
        %v1696 = vpop.f32.mrf.mxu0
        %v1697 = vadd.f32 0.0, %v1696
        %v1698 = vpop.f32.mrf.mxu0
        %1699 = vdwg.mxu0
        %v1716 = vunpack.c.l.b16 %v1596
        %v1717 = vunpack.c.l.b16 %v1597
        %v1718 = vunpack.c.l.b16 %v1598
        %v1719 = vunpack.c.l.b16 %v1599
        %v1720 = vunpack.c.l.b16 %v1600
        %v1721 = vunpack.c.l.b16 %v1601
        %v1722 = vunpack.c.l.b16 %v1602
        %v1723 = vunpack.c.l.b16 %v1603
        %v1724 = vunpack.c.l.b16 %v1604
        %v1725 = vunpack.c.l.b16 %v1605
        %v1726 = vunpack.c.l.b16 %v1606
        %v1727 = vunpack.c.l.b16 %v1607
        %v1728 = vunpack.c.l.b16 %v1608
        %v1729 = vunpack.c.l.b16 %v1609
        %v1730 = vunpack.c.l.b16 %v1610
        %v1731 = vunpack.c.l.b16 %v1611
        %v1732 = vpack.c.b16 %v1717, %v1716
        %v1733 = vpack.c.b16 %v1719, %v1718
        %v1734 = vpack.c.b16 %v1721, %v1720
        %v1735 = vpack.c.b16 %v1723, %v1722
        %v1736 = vpack.c.b16 %v1725, %v1724
        %v1737 = vpack.c.b16 %v1727, %v1726
        %v1738 = vpack.c.b16 %v1729, %v1728
        %v1739 = vpack.c.b16 %v1731, %v1730
        %1748 = vmatpush.bf16.msra.mxu0 %v1739
        %1749 = vmatpush.bf16.msra.mxu0 %v1738
        %1750 = vmatpush.bf16.msra.mxu0 %v1737
        %1751 = vmatpush.bf16.msra.mxu0 %v1736
        %1752 = vmatpush.bf16.msra.mxu0 %v1735
        %1753 = vmatpush.bf16.msra.mxu0 %v1734
        %1754 = vmatpush.bf16.msra.mxu0 %v1733
        %1755 = vmatpush.bf16.msra.mxu0 %v1732
        %1756 = vmatmul.bf16.gmra.mxu0 %v1593
        %v1757 = vpop.f32.mrf.mxu0
        %v1758 = vadd.f32 %v1692, %v1757
        %v1759 = vpop.f32.mrf.mxu0
        %v1760 = vadd.f32 %v1694, %v1759
        %1761 = vmatmul.bf16.gmra.mxu0 %v1594
        %v1762 = vpop.f32.mrf.mxu0
        %v1763 = vadd.f32 %v1697, %v1762
        %v1764 = vpop.f32.mrf.mxu0
        %1765 = vdwg.mxu0
        %v1766 = vld [vmem:[#allocation3 + $0x2] sm:$0xff]
        %v1767 = vld [vmem:[#allocation3 + $0xa] sm:$0xff]
        %v1768 = vld [vmem:[#allocation3 + $0x12] sm:$0xff]
        %v1769 = vpack.c.bf16 %v1767, %v1766
        %v1770 = vpack.c.bf16 %v1768, %v1768
        %s1771 = scalar_lea.vmem [#allocation4], 1088
        %v1772 = vld [vmem:[%s1771] sm:$0xf]
        %v1773 = vld [vmem:[%s1771 + $0x4] sm:$0xf]
        %v1774 = vld [vmem:[%s1771 + $0x8] sm:$0xf]
        %v1775 = vld [vmem:[%s1771 + $0xc] sm:$0xf]
        %v1776 = vld [vmem:[%s1771 + $0x10] sm:$0xf]
        %v1777 = vld [vmem:[%s1771 + $0x14] sm:$0xf]
        %v1778 = vld [vmem:[%s1771 + $0x18] sm:$0xf]
        %v1779 = vld [vmem:[%s1771 + $0x1c] sm:$0xf]
        %v1780 = vld [vmem:[%s1771 + $0x20] sm:$0xf]
        %v1781 = vld [vmem:[%s1771 + $0x24] sm:$0xf]
        %v1782 = vld [vmem:[%s1771 + $0x28] sm:$0xf]
        %v1783 = vld [vmem:[%s1771 + $0x2c] sm:$0xf]
        %v1784 = vld [vmem:[%s1771 + $0x30] sm:$0xf]
        %v1785 = vld [vmem:[%s1771 + $0x34] sm:$0xf]
        %v1786 = vld [vmem:[%s1771 + $0x38] sm:$0xf]
        %v1787 = vld [vmem:[%s1771 + $0x3c] sm:$0xf]
        %v1804 = vunpack.c.l.b16 %v1772
        %v1805 = vunpack.c.l.b16 %v1773
        %v1806 = vunpack.c.l.b16 %v1774
        %v1807 = vunpack.c.l.b16 %v1775
        %v1808 = vunpack.c.l.b16 %v1776
        %v1809 = vunpack.c.l.b16 %v1777
        %v1810 = vunpack.c.l.b16 %v1778
        %v1811 = vunpack.c.l.b16 %v1779
        %v1812 = vunpack.c.l.b16 %v1780
        %v1813 = vunpack.c.l.b16 %v1781
        %v1814 = vunpack.c.l.b16 %v1782
        %v1815 = vunpack.c.l.b16 %v1783
        %v1816 = vunpack.c.l.b16 %v1784
        %v1817 = vunpack.c.l.b16 %v1785
        %v1818 = vunpack.c.l.b16 %v1786
        %v1819 = vunpack.c.l.b16 %v1787
        %v1820 = vpack.c.b16 %v1805, %v1804
        %v1821 = vpack.c.b16 %v1807, %v1806
        %v1822 = vpack.c.b16 %v1809, %v1808
        %v1823 = vpack.c.b16 %v1811, %v1810
        %v1824 = vpack.c.b16 %v1813, %v1812
        %v1825 = vpack.c.b16 %v1815, %v1814
        %v1826 = vpack.c.b16 %v1817, %v1816
        %v1827 = vpack.c.b16 %v1819, %v1818
        %1836 = vmatpush.bf16.msra.mxu0 %v1827
        %1837 = vmatpush.bf16.msra.mxu0 %v1826
        %1838 = vmatpush.bf16.msra.mxu0 %v1825
        %1839 = vmatpush.bf16.msra.mxu0 %v1824
        %1840 = vmatpush.bf16.msra.mxu0 %v1823
        %1841 = vmatpush.bf16.msra.mxu0 %v1822
        %1842 = vmatpush.bf16.msra.mxu0 %v1821
        %1843 = vmatpush.bf16.msra.mxu0 %v1820
        %1844 = vmatmul.bf16.gmra.mxu0 %v1769
        %v1845 = vpop.f32.mrf.mxu0
        %v1846 = vadd.f32 0.0, %v1845
        %v1847 = vpop.f32.mrf.mxu0
        %v1848 = vadd.f32 0.0, %v1847
        %1849 = vmatmul.bf16.gmra.mxu0 %v1770
        %v1850 = vpop.f32.mrf.mxu0
        %v1851 = vadd.f32 0.0, %v1850
        %v1852 = vpop.f32.mrf.mxu0
        %1853 = vdwg.mxu0
        %v1854 = vadd.f32 %v1758, %v1846
        %v1855 = vadd.f32 %v1760, %v1848
        %v1856 = vadd.f32 %v1763, %v1851
        %v1857 = vld [vmem:[#allocation3 + $0x3] sm:$0xff]
        %v1858 = vld [vmem:[#allocation3 + $0xb] sm:$0xff]
        %v1859 = vld [vmem:[#allocation3 + $0x13] sm:$0xff]
        %v1860 = vpack.c.bf16 %v1858, %v1857
        %v1861 = vpack.c.bf16 %v1859, %v1859
        %s1862 = scalar_lea.vmem [#allocation4], 1152
        %v1863 = vld [vmem:[%s1862] sm:$0xf]
        %v1864 = vld [vmem:[%s1862 + $0x4] sm:$0xf]
        %v1865 = vld [vmem:[%s1862 + $0x8] sm:$0xf]
        %v1866 = vld [vmem:[%s1862 + $0xc] sm:$0xf]
        %v1867 = vld [vmem:[%s1862 + $0x10] sm:$0xf]
        %v1868 = vld [vmem:[%s1862 + $0x14] sm:$0xf]
        %v1869 = vld [vmem:[%s1862 + $0x18] sm:$0xf]
        %v1870 = vld [vmem:[%s1862 + $0x1c] sm:$0xf]
        %v1871 = vld [vmem:[%s1862 + $0x20] sm:$0xf]
        %v1872 = vld [vmem:[%s1862 + $0x24] sm:$0xf]
        %v1873 = vld [vmem:[%s1862 + $0x28] sm:$0xf]
        %v1874 = vld [vmem:[%s1862 + $0x2c] sm:$0xf]
        %v1875 = vld [vmem:[%s1862 + $0x30] sm:$0xf]
        %v1876 = vld [vmem:[%s1862 + $0x34] sm:$0xf]
        %v1877 = vld [vmem:[%s1862 + $0x38] sm:$0xf]
        %v1878 = vld [vmem:[%s1862 + $0x3c] sm:$0xf]
        %v1895 = vunpack.c.l.b16 %v1863
        %v1896 = vunpack.c.l.b16 %v1864
        %v1897 = vunpack.c.l.b16 %v1865
        %v1898 = vunpack.c.l.b16 %v1866
        %v1899 = vunpack.c.l.b16 %v1867
        %v1900 = vunpack.c.l.b16 %v1868
        %v1901 = vunpack.c.l.b16 %v1869
        %v1902 = vunpack.c.l.b16 %v1870
        %v1903 = vunpack.c.l.b16 %v1871
        %v1904 = vunpack.c.l.b16 %v1872
        %v1905 = vunpack.c.l.b16 %v1873
        %v1906 = vunpack.c.l.b16 %v1874
        %v1907 = vunpack.c.l.b16 %v1875
        %v1908 = vunpack.c.l.b16 %v1876
        %v1909 = vunpack.c.l.b16 %v1877
        %v1910 = vunpack.c.l.b16 %v1878
        %v1911 = vpack.c.b16 %v1896, %v1895
        %v1912 = vpack.c.b16 %v1898, %v1897
        %v1913 = vpack.c.b16 %v1900, %v1899
        %v1914 = vpack.c.b16 %v1902, %v1901
        %v1915 = vpack.c.b16 %v1904, %v1903
        %v1916 = vpack.c.b16 %v1906, %v1905
        %v1917 = vpack.c.b16 %v1908, %v1907
        %v1918 = vpack.c.b16 %v1910, %v1909
        %1927 = vmatpush.bf16.msra.mxu0 %v1918
        %1928 = vmatpush.bf16.msra.mxu0 %v1917
        %1929 = vmatpush.bf16.msra.mxu0 %v1916
        %1930 = vmatpush.bf16.msra.mxu0 %v1915
        %1931 = vmatpush.bf16.msra.mxu0 %v1914
        %1932 = vmatpush.bf16.msra.mxu0 %v1913
        %1933 = vmatpush.bf16.msra.mxu0 %v1912
        %1934 = vmatpush.bf16.msra.mxu0 %v1911
        %1935 = vmatmul.bf16.gmra.mxu0 %v1860
        %v1936 = vpop.f32.mrf.mxu0
        %v1937 = vadd.f32 0.0, %v1936
        %v1938 = vpop.f32.mrf.mxu0
        %v1939 = vadd.f32 0.0, %v1938
        %1940 = vmatmul.bf16.gmra.mxu0 %v1861
        %v1941 = vpop.f32.mrf.mxu0
        %v1942 = vadd.f32 0.0, %v1941
        %v1943 = vpop.f32.mrf.mxu0
        %1944 = vdwg.mxu0
        %v1945 = vadd.f32 %v1854, %v1937
        %v1946 = vadd.f32 %v1855, %v1939
        %v1947 = vadd.f32 %v1856, %v1942
        %v1948 = vld [vmem:[#allocation3 + $0x4] sm:$0xff]
        %v1949 = vld [vmem:[#allocation3 + $0xc] sm:$0xff]
        %v1950 = vld [vmem:[#allocation3 + $0x14] sm:$0xff]
        %v1951 = vpack.c.bf16 %v1949, %v1948
        %v1952 = vpack.c.bf16 %v1950, %v1950
        %s1953 = scalar_lea.vmem [#allocation4], 1216
        %v1954 = vld [vmem:[%s1953] sm:$0xf]
        %v1955 = vld [vmem:[%s1953 + $0x4] sm:$0xf]
        %v1956 = vld [vmem:[%s1953 + $0x8] sm:$0xf]
        %v1957 = vld [vmem:[%s1953 + $0xc] sm:$0xf]
        %v1958 = vld [vmem:[%s1953 + $0x10] sm:$0xf]
        %v1959 = vld [vmem:[%s1953 + $0x14] sm:$0xf]
        %v1960 = vld [vmem:[%s1953 + $0x18] sm:$0xf]
        %v1961 = vld [vmem:[%s1953 + $0x1c] sm:$0xf]
        %v1962 = vld [vmem:[%s1953 + $0x20] sm:$0xf]
        %v1963 = vld [vmem:[%s1953 + $0x24] sm:$0xf]
        %v1964 = vld [vmem:[%s1953 + $0x28] sm:$0xf]
        %v1965 = vld [vmem:[%s1953 + $0x2c] sm:$0xf]
        %v1966 = vld [vmem:[%s1953 + $0x30] sm:$0xf]
        %v1967 = vld [vmem:[%s1953 + $0x34] sm:$0xf]
        %v1968 = vld [vmem:[%s1953 + $0x38] sm:$0xf]
        %v1969 = vld [vmem:[%s1953 + $0x3c] sm:$0xf]
        %v1986 = vunpack.c.l.b16 %v1954
        %v1987 = vunpack.c.l.b16 %v1955
        %v1988 = vunpack.c.l.b16 %v1956
        %v1989 = vunpack.c.l.b16 %v1957
        %v1990 = vunpack.c.l.b16 %v1958
        %v1991 = vunpack.c.l.b16 %v1959
        %v1992 = vunpack.c.l.b16 %v1960
        %v1993 = vunpack.c.l.b16 %v1961
        %v1994 = vunpack.c.l.b16 %v1962
        %v1995 = vunpack.c.l.b16 %v1963
        %v1996 = vunpack.c.l.b16 %v1964
        %v1997 = vunpack.c.l.b16 %v1965
        %v1998 = vunpack.c.l.b16 %v1966
        %v1999 = vunpack.c.l.b16 %v1967
        %v2000 = vunpack.c.l.b16 %v1968
        %v2001 = vunpack.c.l.b16 %v1969
        %v2002 = vpack.c.b16 %v1987, %v1986
        %v2003 = vpack.c.b16 %v1989, %v1988
        %v2004 = vpack.c.b16 %v1991, %v1990
        %v2005 = vpack.c.b16 %v1993, %v1992
        %v2006 = vpack.c.b16 %v1995, %v1994
        %v2007 = vpack.c.b16 %v1997, %v1996
        %v2008 = vpack.c.b16 %v1999, %v1998
        %v2009 = vpack.c.b16 %v2001, %v2000
        %2018 = vmatpush.bf16.msra.mxu0 %v2009
        %2019 = vmatpush.bf16.msra.mxu0 %v2008
        %2020 = vmatpush.bf16.msra.mxu0 %v2007
        %2021 = vmatpush.bf16.msra.mxu0 %v2006
        %2022 = vmatpush.bf16.msra.mxu0 %v2005
        %2023 = vmatpush.bf16.msra.mxu0 %v2004
        %2024 = vmatpush.bf16.msra.mxu0 %v2003
        %2025 = vmatpush.bf16.msra.mxu0 %v2002
        %2026 = vmatmul.bf16.gmra.mxu0 %v1951
        %v2027 = vpop.f32.mrf.mxu0
        %v2028 = vadd.f32 0.0, %v2027
        %v2029 = vpop.f32.mrf.mxu0
        %v2030 = vadd.f32 0.0, %v2029
        %2031 = vmatmul.bf16.gmra.mxu0 %v1952
        %v2032 = vpop.f32.mrf.mxu0
        %v2033 = vadd.f32 0.0, %v2032
        %v2034 = vpop.f32.mrf.mxu0
        %2035 = vdwg.mxu0
        %v2036 = vadd.f32 %v1945, %v2028
        %v2037 = vadd.f32 %v1946, %v2030
        %v2038 = vadd.f32 %v1947, %v2033
        %v2040 = vperm.slane %v1589, 0
        %v2042 = vadd.f32 %v2036, %v2040
        %v2043 = vadd.f32 %v2037, %v2040
        %v2044 = vadd.f32 %v2038, %v2040
        %v2045 = vtanh.pop %v2042
        %v2046 = vtanh.pop %v2043
        %v2047 = vtanh.pop %v2044
        %2048 = vst [vmem:[#allocation2 + $0x2] sm:$0xff] %v2045
        %2049 = vst [vmem:[#allocation2 + $0xa] sm:$0xff] %v2046
        %2050 = vst [vmem:[#allocation2 + $0x12] sm:$0xff] %v2047
        %s2051 = scalar_lea.vmem %s2, 4
        %v2052 = vld [vmem:[%s2051] sm:$0x1]
        %v2053 = vld [vmem:[#allocation2] sm:$0xff]
        %v2054 = vld [vmem:[#allocation2 + $0x8] sm:$0xff]
        %v2055 = vld [vmem:[#allocation2 + $0x10] sm:$0xff]
        %v2056 = vpack.c.bf16 %v2054, %v2053
        %v2057 = vpack.c.bf16 %v2055, %v2055
        %s2058 = scalar_lea.vmem [#allocation4], 1280
        %v2059 = vld [vmem:[%s2058] sm:$0xf]
        %v2060 = vld [vmem:[%s2058 + $0x4] sm:$0xf]
        %v2061 = vld [vmem:[%s2058 + $0x8] sm:$0xf]
        %v2062 = vld [vmem:[%s2058 + $0xc] sm:$0xf]
        %v2063 = vld [vmem:[%s2058 + $0x10] sm:$0xf]
        %v2064 = vld [vmem:[%s2058 + $0x14] sm:$0xf]
        %v2065 = vld [vmem:[%s2058 + $0x18] sm:$0xf]
        %v2066 = vld [vmem:[%s2058 + $0x1c] sm:$0xf]
        %v2067 = vld [vmem:[%s2058 + $0x20] sm:$0xf]
        %v2068 = vld [vmem:[%s2058 + $0x24] sm:$0xf]
        %v2069 = vld [vmem:[%s2058 + $0x28] sm:$0xf]
        %v2070 = vld [vmem:[%s2058 + $0x2c] sm:$0xf]
        %v2071 = vld [vmem:[%s2058 + $0x30] sm:$0xf]
        %v2072 = vld [vmem:[%s2058 + $0x34] sm:$0xf]
        %v2073 = vld [vmem:[%s2058 + $0x38] sm:$0xf]
        %v2074 = vld [vmem:[%s2058 + $0x3c] sm:$0xf]
        %v2075 = vld [vmem:[#allocation2 + $0x1] sm:$0xff]
        %v2076 = vld [vmem:[#allocation2 + $0x9] sm:$0xff]
        %v2077 = vld [vmem:[#allocation2 + $0x11] sm:$0xff]
        %v2078 = vpack.c.bf16 %v2076, %v2075
        %v2079 = vpack.c.bf16 %v2077, %v2077
        %s2080 = scalar_lea.vmem [#allocation4], 1344
        %v2081 = vld [vmem:[%s2080] sm:$0xf]
        %v2082 = vld [vmem:[%s2080 + $0x4] sm:$0xf]
        %v2083 = vld [vmem:[%s2080 + $0x8] sm:$0xf]
        %v2084 = vld [vmem:[%s2080 + $0xc] sm:$0xf]
        %v2085 = vld [vmem:[%s2080 + $0x10] sm:$0xf]
        %v2086 = vld [vmem:[%s2080 + $0x14] sm:$0xf]
        %v2087 = vld [vmem:[%s2080 + $0x18] sm:$0xf]
        %v2088 = vld [vmem:[%s2080 + $0x1c] sm:$0xf]
        %v2089 = vld [vmem:[%s2080 + $0x20] sm:$0xf]
        %v2090 = vld [vmem:[%s2080 + $0x24] sm:$0xf]
        %v2091 = vld [vmem:[%s2080 + $0x28] sm:$0xf]
        %v2092 = vld [vmem:[%s2080 + $0x2c] sm:$0xf]
        %v2093 = vld [vmem:[%s2080 + $0x30] sm:$0xf]
        %v2094 = vld [vmem:[%s2080 + $0x34] sm:$0xf]
        %v2095 = vld [vmem:[%s2080 + $0x38] sm:$0xf]
        %v2096 = vld [vmem:[%s2080 + $0x3c] sm:$0xf]
        %v2113 = vunpack.c.l.b16 %v2081
        %v2114 = vunpack.c.l.b16 %v2082
        %v2115 = vunpack.c.l.b16 %v2083
        %v2116 = vunpack.c.l.b16 %v2084
        %v2117 = vunpack.c.l.b16 %v2085
        %v2118 = vunpack.c.l.b16 %v2086
        %v2119 = vunpack.c.l.b16 %v2087
        %v2120 = vunpack.c.l.b16 %v2088
        %v2121 = vunpack.c.l.b16 %v2089
        %v2122 = vunpack.c.l.b16 %v2090
        %v2123 = vunpack.c.l.b16 %v2091
        %v2124 = vunpack.c.l.b16 %v2092
        %v2125 = vunpack.c.l.b16 %v2093
        %v2126 = vunpack.c.l.b16 %v2094
        %v2127 = vunpack.c.l.b16 %v2095
        %v2128 = vunpack.c.l.b16 %v2096
        %v2129 = vpack.c.b16 %v2114, %v2113
        %v2130 = vpack.c.b16 %v2116, %v2115
        %v2131 = vpack.c.b16 %v2118, %v2117
        %v2132 = vpack.c.b16 %v2120, %v2119
        %v2133 = vpack.c.b16 %v2122, %v2121
        %v2134 = vpack.c.b16 %v2124, %v2123
        %v2135 = vpack.c.b16 %v2126, %v2125
        %v2136 = vpack.c.b16 %v2128, %v2127
        %2145 = vmatpush.bf16.msra.mxu0 %v2136
        %2146 = vmatpush.bf16.msra.mxu0 %v2135
        %2147 = vmatpush.bf16.msra.mxu0 %v2134
        %2148 = vmatpush.bf16.msra.mxu0 %v2133
        %2149 = vmatpush.bf16.msra.mxu0 %v2132
        %2150 = vmatpush.bf16.msra.mxu0 %v2131
        %2151 = vmatpush.bf16.msra.mxu0 %v2130
        %2152 = vmatpush.bf16.msra.mxu0 %v2129
        %2153 = vmatmul.bf16.gmra.mxu0 %v2078
        %v2154 = vpop.f32.mrf.mxu0
        %v2155 = vadd.f32 0.0, %v2154
        %v2156 = vpop.f32.mrf.mxu0
        %v2157 = vadd.f32 0.0, %v2156
        %2158 = vmatmul.bf16.gmra.mxu0 %v2079
        %v2159 = vpop.f32.mrf.mxu0
        %v2160 = vadd.f32 0.0, %v2159
        %v2161 = vpop.f32.mrf.mxu0
        %2162 = vdwg.mxu0
        %v2179 = vunpack.c.l.b16 %v2059
        %v2180 = vunpack.c.l.b16 %v2060
        %v2181 = vunpack.c.l.b16 %v2061
        %v2182 = vunpack.c.l.b16 %v2062
        %v2183 = vunpack.c.l.b16 %v2063
        %v2184 = vunpack.c.l.b16 %v2064
        %v2185 = vunpack.c.l.b16 %v2065
        %v2186 = vunpack.c.l.b16 %v2066
        %v2187 = vunpack.c.l.b16 %v2067
        %v2188 = vunpack.c.l.b16 %v2068
        %v2189 = vunpack.c.l.b16 %v2069
        %v2190 = vunpack.c.l.b16 %v2070
        %v2191 = vunpack.c.l.b16 %v2071
        %v2192 = vunpack.c.l.b16 %v2072
        %v2193 = vunpack.c.l.b16 %v2073
        %v2194 = vunpack.c.l.b16 %v2074
        %v2195 = vpack.c.b16 %v2180, %v2179
        %v2196 = vpack.c.b16 %v2182, %v2181
        %v2197 = vpack.c.b16 %v2184, %v2183
        %v2198 = vpack.c.b16 %v2186, %v2185
        %v2199 = vpack.c.b16 %v2188, %v2187
        %v2200 = vpack.c.b16 %v2190, %v2189
        %v2201 = vpack.c.b16 %v2192, %v2191
        %v2202 = vpack.c.b16 %v2194, %v2193
        %2211 = vmatpush.bf16.msra.mxu0 %v2202
        %2212 = vmatpush.bf16.msra.mxu0 %v2201
        %2213 = vmatpush.bf16.msra.mxu0 %v2200
        %2214 = vmatpush.bf16.msra.mxu0 %v2199
        %2215 = vmatpush.bf16.msra.mxu0 %v2198
        %2216 = vmatpush.bf16.msra.mxu0 %v2197
        %2217 = vmatpush.bf16.msra.mxu0 %v2196
        %2218 = vmatpush.bf16.msra.mxu0 %v2195
        %2219 = vmatmul.bf16.gmra.mxu0 %v2056
        %v2220 = vpop.f32.mrf.mxu0
        %v2221 = vadd.f32 %v2155, %v2220
        %v2222 = vpop.f32.mrf.mxu0
        %v2223 = vadd.f32 %v2157, %v2222
        %2224 = vmatmul.bf16.gmra.mxu0 %v2057
        %v2225 = vpop.f32.mrf.mxu0
        %v2226 = vadd.f32 %v2160, %v2225
        %v2227 = vpop.f32.mrf.mxu0
        %2228 = vdwg.mxu0
        %v2229 = vld [vmem:[#allocation2 + $0x2] sm:$0xff]
        %v2230 = vld [vmem:[#allocation2 + $0xa] sm:$0xff]
        %v2231 = vld [vmem:[#allocation2 + $0x12] sm:$0xff]
        %v2232 = vpack.c.bf16 %v2230, %v2229
        %v2233 = vpack.c.bf16 %v2231, %v2231
        %s2234 = scalar_lea.vmem [#allocation4], 1408
        %v2235 = vld [vmem:[%s2234] sm:$0xf]
        %v2236 = vld [vmem:[%s2234 + $0x4] sm:$0xf]
        %v2237 = vld [vmem:[%s2234 + $0x8] sm:$0xf]
        %v2238 = vld [vmem:[%s2234 + $0xc] sm:$0xf]
        %v2239 = vld [vmem:[%s2234 + $0x10] sm:$0xf]
        %v2240 = vld [vmem:[%s2234 + $0x14] sm:$0xf]
        %v2241 = vld [vmem:[%s2234 + $0x18] sm:$0xf]
        %v2242 = vld [vmem:[%s2234 + $0x1c] sm:$0xf]
        %v2243 = vld [vmem:[%s2234 + $0x20] sm:$0xf]
        %v2244 = vld [vmem:[%s2234 + $0x24] sm:$0xf]
        %v2245 = vld [vmem:[%s2234 + $0x28] sm:$0xf]
        %v2246 = vld [vmem:[%s2234 + $0x2c] sm:$0xf]
        %v2247 = vld [vmem:[%s2234 + $0x30] sm:$0xf]
        %v2248 = vld [vmem:[%s2234 + $0x34] sm:$0xf]
        %v2249 = vld [vmem:[%s2234 + $0x38] sm:$0xf]
        %v2250 = vld [vmem:[%s2234 + $0x3c] sm:$0xf]
        %v2267 = vunpack.c.l.b16 %v2235
        %v2268 = vunpack.c.l.b16 %v2236
        %v2269 = vunpack.c.l.b16 %v2237
        %v2270 = vunpack.c.l.b16 %v2238
        %v2271 = vunpack.c.l.b16 %v2239
        %v2272 = vunpack.c.l.b16 %v2240
        %v2273 = vunpack.c.l.b16 %v2241
        %v2274 = vunpack.c.l.b16 %v2242
        %v2275 = vunpack.c.l.b16 %v2243
        %v2276 = vunpack.c.l.b16 %v2244
        %v2277 = vunpack.c.l.b16 %v2245
        %v2278 = vunpack.c.l.b16 %v2246
        %v2279 = vunpack.c.l.b16 %v2247
        %v2280 = vunpack.c.l.b16 %v2248
        %v2281 = vunpack.c.l.b16 %v2249
        %v2282 = vunpack.c.l.b16 %v2250
        %v2283 = vpack.c.b16 %v2268, %v2267
        %v2284 = vpack.c.b16 %v2270, %v2269
        %v2285 = vpack.c.b16 %v2272, %v2271
        %v2286 = vpack.c.b16 %v2274, %v2273
        %v2287 = vpack.c.b16 %v2276, %v2275
        %v2288 = vpack.c.b16 %v2278, %v2277
        %v2289 = vpack.c.b16 %v2280, %v2279
        %v2290 = vpack.c.b16 %v2282, %v2281
        %2299 = vmatpush.bf16.msra.mxu0 %v2290
        %2300 = vmatpush.bf16.msra.mxu0 %v2289
        %2301 = vmatpush.bf16.msra.mxu0 %v2288
        %2302 = vmatpush.bf16.msra.mxu0 %v2287
        %2303 = vmatpush.bf16.msra.mxu0 %v2286
        %2304 = vmatpush.bf16.msra.mxu0 %v2285
        %2305 = vmatpush.bf16.msra.mxu0 %v2284
        %2306 = vmatpush.bf16.msra.mxu0 %v2283
        %2307 = vmatmul.bf16.gmra.mxu0 %v2232
        %v2308 = vpop.f32.mrf.mxu0
        %v2309 = vadd.f32 0.0, %v2308
        %v2310 = vpop.f32.mrf.mxu0
        %v2311 = vadd.f32 0.0, %v2310
        %2312 = vmatmul.bf16.gmra.mxu0 %v2233
        %v2313 = vpop.f32.mrf.mxu0
        %v2314 = vadd.f32 0.0, %v2313
        %v2315 = vpop.f32.mrf.mxu0
        %2316 = vdwg.mxu0
        %v2317 = vadd.f32 %v2221, %v2309
        %v2318 = vadd.f32 %v2223, %v2311
        %v2319 = vadd.f32 %v2226, %v2314
        %v2320 = vld [vmem:[#allocation2 + $0x3] sm:$0xff]
        %v2321 = vld [vmem:[#allocation2 + $0xb] sm:$0xff]
        %v2322 = vld [vmem:[#allocation2 + $0x13] sm:$0xff]
        %v2323 = vpack.c.bf16 %v2321, %v2320
        %v2324 = vpack.c.bf16 %v2322, %v2322
        %s2325 = scalar_lea.vmem [#allocation4], 1472
        %v2326 = vld [vmem:[%s2325] sm:$0xf]
        %v2327 = vld [vmem:[%s2325 + $0x4] sm:$0xf]
        %v2328 = vld [vmem:[%s2325 + $0x8] sm:$0xf]
        %v2329 = vld [vmem:[%s2325 + $0xc] sm:$0xf]
        %v2330 = vld [vmem:[%s2325 + $0x10] sm:$0xf]
        %v2331 = vld [vmem:[%s2325 + $0x14] sm:$0xf]
        %v2332 = vld [vmem:[%s2325 + $0x18] sm:$0xf]
        %v2333 = vld [vmem:[%s2325 + $0x1c] sm:$0xf]
        %v2334 = vld [vmem:[%s2325 + $0x20] sm:$0xf]
        %v2335 = vld [vmem:[%s2325 + $0x24] sm:$0xf]
        %v2336 = vld [vmem:[%s2325 + $0x28] sm:$0xf]
        %v2337 = vld [vmem:[%s2325 + $0x2c] sm:$0xf]
        %v2338 = vld [vmem:[%s2325 + $0x30] sm:$0xf]
        %v2339 = vld [vmem:[%s2325 + $0x34] sm:$0xf]
        %v2340 = vld [vmem:[%s2325 + $0x38] sm:$0xf]
        %v2341 = vld [vmem:[%s2325 + $0x3c] sm:$0xf]
        %v2358 = vunpack.c.l.b16 %v2326
        %v2359 = vunpack.c.l.b16 %v2327
        %v2360 = vunpack.c.l.b16 %v2328
        %v2361 = vunpack.c.l.b16 %v2329
        %v2362 = vunpack.c.l.b16 %v2330
        %v2363 = vunpack.c.l.b16 %v2331
        %v2364 = vunpack.c.l.b16 %v2332
        %v2365 = vunpack.c.l.b16 %v2333
        %v2366 = vunpack.c.l.b16 %v2334
        %v2367 = vunpack.c.l.b16 %v2335
        %v2368 = vunpack.c.l.b16 %v2336
        %v2369 = vunpack.c.l.b16 %v2337
        %v2370 = vunpack.c.l.b16 %v2338
        %v2371 = vunpack.c.l.b16 %v2339
        %v2372 = vunpack.c.l.b16 %v2340
        %v2373 = vunpack.c.l.b16 %v2341
        %v2374 = vpack.c.b16 %v2359, %v2358
        %v2375 = vpack.c.b16 %v2361, %v2360
        %v2376 = vpack.c.b16 %v2363, %v2362
        %v2377 = vpack.c.b16 %v2365, %v2364
        %v2378 = vpack.c.b16 %v2367, %v2366
        %v2379 = vpack.c.b16 %v2369, %v2368
        %v2380 = vpack.c.b16 %v2371, %v2370
        %v2381 = vpack.c.b16 %v2373, %v2372
        %2390 = vmatpush.bf16.msra.mxu0 %v2381
        %2391 = vmatpush.bf16.msra.mxu0 %v2380
        %2392 = vmatpush.bf16.msra.mxu0 %v2379
        %2393 = vmatpush.bf16.msra.mxu0 %v2378
        %2394 = vmatpush.bf16.msra.mxu0 %v2377
        %2395 = vmatpush.bf16.msra.mxu0 %v2376
        %2396 = vmatpush.bf16.msra.mxu0 %v2375
        %2397 = vmatpush.bf16.msra.mxu0 %v2374
        %2398 = vmatmul.bf16.gmra.mxu0 %v2323
        %v2399 = vpop.f32.mrf.mxu0
        %v2400 = vadd.f32 0.0, %v2399
        %v2401 = vpop.f32.mrf.mxu0
        %v2402 = vadd.f32 0.0, %v2401
        %2403 = vmatmul.bf16.gmra.mxu0 %v2324
        %v2404 = vpop.f32.mrf.mxu0
        %v2405 = vadd.f32 0.0, %v2404
        %v2406 = vpop.f32.mrf.mxu0
        %2407 = vdwg.mxu0
        %v2408 = vadd.f32 %v2317, %v2400
        %v2409 = vadd.f32 %v2318, %v2402
        %v2410 = vadd.f32 %v2319, %v2405
        %v2411 = vld [vmem:[#allocation2 + $0x4] sm:$0xff]
        %v2412 = vld [vmem:[#allocation2 + $0xc] sm:$0xff]
        %v2413 = vld [vmem:[#allocation2 + $0x14] sm:$0xff]
        %v2414 = vpack.c.bf16 %v2412, %v2411
        %v2415 = vpack.c.bf16 %v2413, %v2413
        %s2416 = scalar_lea.vmem [#allocation4], 1536
        %v2417 = vld [vmem:[%s2416] sm:$0xf]
        %v2418 = vld [vmem:[%s2416 + $0x4] sm:$0xf]
        %v2419 = vld [vmem:[%s2416 + $0x8] sm:$0xf]
        %v2420 = vld [vmem:[%s2416 + $0xc] sm:$0xf]
        %v2421 = vld [vmem:[%s2416 + $0x10] sm:$0xf]
        %v2422 = vld [vmem:[%s2416 + $0x14] sm:$0xf]
        %v2423 = vld [vmem:[%s2416 + $0x18] sm:$0xf]
        %v2424 = vld [vmem:[%s2416 + $0x1c] sm:$0xf]
        %v2425 = vld [vmem:[%s2416 + $0x20] sm:$0xf]
        %v2426 = vld [vmem:[%s2416 + $0x24] sm:$0xf]
        %v2427 = vld [vmem:[%s2416 + $0x28] sm:$0xf]
        %v2428 = vld [vmem:[%s2416 + $0x2c] sm:$0xf]
        %v2429 = vld [vmem:[%s2416 + $0x30] sm:$0xf]
        %v2430 = vld [vmem:[%s2416 + $0x34] sm:$0xf]
        %v2431 = vld [vmem:[%s2416 + $0x38] sm:$0xf]
        %v2432 = vld [vmem:[%s2416 + $0x3c] sm:$0xf]
        %v2449 = vunpack.c.l.b16 %v2417
        %v2450 = vunpack.c.l.b16 %v2418
        %v2451 = vunpack.c.l.b16 %v2419
        %v2452 = vunpack.c.l.b16 %v2420
        %v2453 = vunpack.c.l.b16 %v2421
        %v2454 = vunpack.c.l.b16 %v2422
        %v2455 = vunpack.c.l.b16 %v2423
        %v2456 = vunpack.c.l.b16 %v2424
        %v2457 = vunpack.c.l.b16 %v2425
        %v2458 = vunpack.c.l.b16 %v2426
        %v2459 = vunpack.c.l.b16 %v2427
        %v2460 = vunpack.c.l.b16 %v2428
        %v2461 = vunpack.c.l.b16 %v2429
        %v2462 = vunpack.c.l.b16 %v2430
        %v2463 = vunpack.c.l.b16 %v2431
        %v2464 = vunpack.c.l.b16 %v2432
        %v2465 = vpack.c.b16 %v2450, %v2449
        %v2466 = vpack.c.b16 %v2452, %v2451
        %v2467 = vpack.c.b16 %v2454, %v2453
        %v2468 = vpack.c.b16 %v2456, %v2455
        %v2469 = vpack.c.b16 %v2458, %v2457
        %v2470 = vpack.c.b16 %v2460, %v2459
        %v2471 = vpack.c.b16 %v2462, %v2461
        %v2472 = vpack.c.b16 %v2464, %v2463
        %2481 = vmatpush.bf16.msra.mxu0 %v2472
        %2482 = vmatpush.bf16.msra.mxu0 %v2471
        %2483 = vmatpush.bf16.msra.mxu0 %v2470
        %2484 = vmatpush.bf16.msra.mxu0 %v2469
        %2485 = vmatpush.bf16.msra.mxu0 %v2468
        %2486 = vmatpush.bf16.msra.mxu0 %v2467
        %2487 = vmatpush.bf16.msra.mxu0 %v2466
        %2488 = vmatpush.bf16.msra.mxu0 %v2465
        %2489 = vmatmul.bf16.gmra.mxu0 %v2414
        %v2490 = vpop.f32.mrf.mxu0
        %v2491 = vadd.f32 0.0, %v2490
        %v2492 = vpop.f32.mrf.mxu0
        %v2493 = vadd.f32 0.0, %v2492
        %2494 = vmatmul.bf16.gmra.mxu0 %v2415
        %v2495 = vpop.f32.mrf.mxu0
        %v2496 = vadd.f32 0.0, %v2495
        %v2497 = vpop.f32.mrf.mxu0
        %2498 = vdwg.mxu0
        %v2499 = vadd.f32 %v2408, %v2491
        %v2500 = vadd.f32 %v2409, %v2493
        %v2501 = vadd.f32 %v2410, %v2496
        %v2503 = vperm.slane %v2052, 0
        %v2505 = vadd.f32 %v2499, %v2503
        %v2506 = vadd.f32 %v2500, %v2503
        %v2507 = vadd.f32 %v2501, %v2503
        %2508 = vst.msk [vmem:[%s187] sm:$0xff] %vm197, %v2505
        %2509 = vst.msk [vmem:[%s187 + $0x8] sm:$0xff] %vm197, %v2506
        %2510 = vst.msk [vmem:[%s187 + $0x10] sm:$0xff] %vm197, %v2507
        %p2511 = scmp.lt.s32.totalorder %s15, 1
        %s2512 = scalar_select %p2511, %s15, 1
        %s2513 = smul.addr %s2512, 3
        %s2514 = smul.addr %s2513, 8
        %s2515 = scalar_lea.vmem %s3, %s2514
        // Predicated region
        $region37: #{postnet_forward.1} parent=31 // pred_check
          %p2516 = pneg %p101
        $region38: #{postnet_forward.1} parent=31 // pred_check_branch
          %2518 = sbr.rel (%p2516) target = $region40
        $region39: #{postnet_forward.1} parent=31 // pred_region
          _
        $region40: #{postnet_forward.1} parent=31 // pred_fallthru
          _
      $region32: #{postnet_forward.1} parent=5 // pred_fallthru
        _
      %p2519 = scmp.le.s32.totalorder 2, %s10
      // Predicated region
      $region41: #{postnet_forward.1} parent=5 // pred_check
        %p2520 = pneg %p2519
      $region42: #{postnet_forward.1} parent=5 // pred_check_branch
        %2522 = sbr.rel (%p2520) target = $region44
      $region43: #{postnet_forward.1} parent=5 // pred_region
        %s2523 = ssub.s32 %s10, 2
        // Predicated region
        $region45: #{postnet_forward.1} parent=43 // pred_check
          %p2524 = pneg %p107
        $region46: #{postnet_forward.1} parent=43 // pred_check_branch
          %2526 = sbr.rel (%p2524) target = $region48
        $region47: #{postnet_forward.1} parent=43 // pred_region
          %p2527 = scmp.lt.s32.totalorder %s16, 1
          %s2528 = scalar_select %p2527, %s16, 1
          %s2529 = smul.addr %s2528, 3
          %s2530 = smul.addr %s2529, 8
          %s2531 = scalar_lea.vmem %s3, %s2530
        $region48: #{postnet_forward.1} parent=43 // pred_fallthru
          _
      $region44: #{postnet_forward.1} parent=5 // pred_fallthru
        _
    $region6: #{postnet_forward.1} parent=1 // loop_footer
      %s14 = sadd.s32 1, %s10
    $region7: #{postnet_forward.1} parent=1 // loop_footer_branch
      %9 = sbr.rel target = $region3
    $region8: #{postnet_forward.1} parent=1 // loop_exit
      _
    %2532 = vsyncpa [#allocation5], 1
    %s2533 = scalar_lea.sflag [#allocation5], 1
    %2534 = vsyncpa %s2533, 1

</llo_original>
